<compile_context>
chip_gen: v5e
topology: v5e:2x2
jax: 0.10.0
libtpu: 0.0.40
codegen_flags: <defaults>
</compile_context>

<pallas_src>
import functools
import math

import numpy as np
import jax
import jax.numpy as jnp
from jax.experimental import pallas as pl
from jax.experimental.pallas import tpu as pltpu

# ---- module hyper-parameters (from the PyTorch __init__) --------------------
VOCAB = 50          # vocab_size
MAX_SEQ_LEN = 20    # seq_len argument (positional-encoding table length)
D_MODEL = 4         # embedding_dim
N_HEAD = 2
HEAD_DIM = D_MODEL // N_HEAD
D_FF = 32
N_LAYERS = 3
N_OUT = 50
N_OUT_PAD = 128     # lane-dense output width (sliced back to 50 in the wrapper)
LN_EPS = 1e-5
NEG_INF = -1e30


def _round_up(x, m):
    return (x + m - 1) // m * m


# ---- packed weight slab layout: (W_TOTAL_ROWS, D_MODEL) ----------------------
EMBPE_OFF = 0                                       # rows 0:50 emb, 50:70 PE, rest zeros
EMBPE_ROWS = 128
PROJ_OFF = EMBPE_OFF + EMBPE_ROWS                   # 128: output proj W, padded to 128 rows
LAYER_W_OFF = PROJ_OFF + N_OUT_PAD                  # 256
# per-layer sub-offsets (rows within a layer block)
QKV_COLS = 2 * N_HEAD * HEAD_DIM + N_HEAD * D_MODEL  # 16: [q0,q1,k0,k1,vwide0(4),vwide1(4)]
W_QKV = 0                                           # 16 rows: fused (wide-V) QKV weight^T
W_WOT = _round_up(W_QKV + QKV_COLS, 8)              # 16: out_proj_w.T (4 rows)
W_FF1 = _round_up(W_WOT + D_MODEL, 8)               # 24: ff1_w (32 rows)
W_FF2T = W_FF1 + D_FF                               # 56: ff2_w.T (32 rows)
LAYER_W_STRIDE = W_FF2T + D_FF                      # 88
W_TOTAL_ROWS = LAYER_W_OFF + N_LAYERS * LAYER_W_STRIDE   # 520

# ---- packed bias / layer-norm slab layout: (B_TOTAL_ROWS, 128) ---------------
BIAS_COLS = 128
B_PROJB = 0                                         # output-projection bias (padded to 128)
LAYER_B_OFF = 8
B_QKV = 0                                           # fused qkv bias row (width QKV_COLS)
B_OUTB = 1                                          # out_proj bias (width D_MODEL)
B_LN1W, B_LN1B, B_LN2W, B_LN2B = 2, 3, 4, 5         # (width D_MODEL)
B_FF1 = 6                                           # (width D_FF)
B_FF2 = 7                                           # (width D_MODEL)
LAYER_B_STRIDE = 8
B_TOTAL_ROWS = LAYER_B_OFF + N_LAYERS * LAYER_B_STRIDE   # 32

# ---- constant slab (built in the wrapper, depends only on (B, S)) ------------
MASK_OFF = 0                                        # bs rows: additive block-diagonal mask


# ---- small helpers used inside the kernel -----------------------------------
def _matT(x, w):
    """x @ w.T with f32 accumulation.  x: (N, K), w: (R, K) -> (N, R)."""
    return jax.lax.dot_general(x, w, (((1,), (1,)), ((), ())),
                               preferred_element_type=jnp.float32)


def _layer_norm(x, w, b):
    """LayerNorm over the last axis. x: (N, D), w/b: (1, D)."""
    mu = jnp.mean(x, axis=-1, keepdims=True)
    var = jnp.mean(jnp.square(x - mu), axis=-1, keepdims=True)
    return (x - mu) * jax.lax.rsqrt(var + LN_EPS) * w + b


# ---- Pallas kernel: embed+PE + 3 encoder layers + mean pool + output proj ----
def encoder_kernel(ids_ref, w_ref, b_ref, c_ref, out_ref, *, batch, seq):
    f32 = jnp.float32
    bs = batch * seq
    hd, nh, d = HEAD_DIM, N_HEAD, D_MODEL

    # ---- fused embedding gather + positional encoding (one one-hot matmul) ---
    idx = ids_ref[...]                                            # (bs, 2) int32
    lane = jax.lax.broadcasted_iota(jnp.int32, (bs, EMBPE_ROWS), 1)
    hot = jnp.logical_or(lane == idx[:, 0:1],                     # token one-hot
                         lane == idx[:, 1:2]).astype(f32)         # VOCAB+pos one-hot
    x = jnp.dot(hot, w_ref[EMBPE_OFF:EMBPE_OFF + EMBPE_ROWS, :],
                preferred_element_type=f32)                       # emb + PE, (bs, D)

    # precomputed additive (0 / -1e30) block-diagonal same-batch mask
    mask_add = c_ref[MASK_OFF:MASK_OFF + bs, 0:bs]                # (bs, bs)

    for l in range(N_LAYERS):
        wbase = LAYER_W_OFF + l * LAYER_W_STRIDE
        bbase = LAYER_B_OFF + l * LAYER_B_STRIDE

        # ---- multi-head self-attention (post-LN residual) --------------------
        # single fused QKV matmul; columns = [q_h0,q_h1,k_h0,k_h1,vwide_h0,vwide_h1]
        qkv = _matT(x, w_ref[wbase + W_QKV:wbase + W_QKV + QKV_COLS, :]) \
            + b_ref[bbase + B_QKV:bbase + B_QKV + 1, 0:QKV_COLS]   # (bs, 16)

        o = jnp.zeros((bs, d), f32)
        for h in range(nh):
            q = qkv[:, h * hd:(h + 1) * hd]                        # pre-scaled by 1/sqrt(hd)
            k = qkv[:, nh * hd + h * hd: nh * hd + (h + 1) * hd]
            vw = qkv[:, 2 * nh * hd + h * d: 2 * nh * hd + (h + 1) * d]   # (bs, 4) wide V
            s = _matT(q, k) + mask_add                             # (bs, bs)
            s = s - jnp.max(s, axis=-1, keepdims=True)
            p = jnp.exp(s)
            p = p * pl.reciprocal(jnp.sum(p, axis=-1, keepdims=True), approx=True)
            # wide-V places head h's output at its concat columns -> sum == concat
            o = o + jnp.dot(p, vw, preferred_element_type=f32)     # (bs, 4)

        attn = jnp.dot(o, w_ref[wbase + W_WOT:wbase + W_WOT + d, :],
                       preferred_element_type=f32) \
             + b_ref[bbase + B_OUTB:bbase + B_OUTB + 1, 0:d]

        x = _layer_norm(x + attn,
                        b_ref[bbase + B_LN1W:bbase + B_LN1W + 1, 0:d],
                        b_ref[bbase + B_LN1B:bbase + B_LN1B + 1, 0:d])

        # ---- feed-forward block ----------------------------------------------
        h1 = jnp.maximum(
            _matT(x, w_ref[wbase + W_FF1:wbase + W_FF1 + D_FF, :])
            + b_ref[bbase + B_FF1:bbase + B_FF1 + 1, 0:D_FF], 0.0)          # (bs, FF)
        h2 = jnp.dot(h1, w_ref[wbase + W_FF2T:wbase + W_FF2T + D_FF, :],
                     preferred_element_type=f32) \
           + b_ref[bbase + B_FF2:bbase + B_FF2 + 1, 0:d]                    # (bs, D)
        x = _layer_norm(x + h2,
                        b_ref[bbase + B_LN2W:bbase + B_LN2W + 1, 0:d],
                        b_ref[bbase + B_LN2B:bbase + B_LN2B + 1, 0:d])

    # ---- mean over sequence (precomputed averaging matmul) + output proj -----
    pool_off = _round_up(bs, 8)
    pool = c_ref[pool_off:pool_off + batch, 0:bs]                  # (B, bs), rows = 1/S blocks
    pooled = jnp.dot(pool, x, preferred_element_type=f32)          # (B, D)
    out_ref[...] = _matT(pooled, w_ref[PROJ_OFF:PROJ_OFF + N_OUT_PAD, :]) \
                 + b_ref[B_PROJB:B_PROJB + 1, :]                   # (B, 128) lane-dense store


# ---- wrapper / host-side packing ---------------------------------------------
def make_positional_encoding(max_len, d_model):
    pos = jnp.arange(max_len, dtype=jnp.float32)[:, None]
    div = jnp.exp(jnp.arange(0, d_model, 2, dtype=jnp.float32)
                  * (-math.log(10000.0) / d_model))
    # d_model is even here, so the even/odd interleave is sin/cos pairs.
    pe = jnp.stack([jnp.sin(pos * div), jnp.cos(pos * div)], axis=-1)
    return pe.reshape(max_len, d_model)


def init_params(key):
    keys = jax.random.split(key, 12)
    L, D, FF = N_LAYERS, D_MODEL, D_FF

    def normal(k, shape, scale):
        return (scale * jax.random.normal(k, shape)).astype(jnp.float32)

    return {
        'emb':        normal(keys[0], (VOCAB, D), 1.0),
        'in_proj_w':  normal(keys[1], (L, 3 * D, D), 1.0 / math.sqrt(D)),
        'in_proj_b':  normal(keys[2], (L, 1, 3 * D), 0.02),
        'out_proj_w': normal(keys[3], (L, D, D), 1.0 / math.sqrt(D)),
        'out_proj_b': normal(keys[4], (L, 1, D), 0.02),
        'ln1_w': jnp.ones((L, 1, D), jnp.float32),
        'ln1_b': jnp.zeros((L, 1, D), jnp.float32),
        'ln2_w': jnp.ones((L, 1, D), jnp.float32),
        'ln2_b': jnp.zeros((L, 1, D), jnp.float32),
        'ff1_w': normal(keys[5], (L, FF, D), 1.0 / math.sqrt(D)),
        'ff1_b': normal(keys[6], (L, 1, FF), 0.02),
        'ff2_w': normal(keys[7], (L, D, FF), 1.0 / math.sqrt(FF)),
        'ff2_b': normal(keys[8], (L, 1, D), 0.02),
        'proj_w': normal(keys[9], (N_OUT, D), 1.0 / math.sqrt(D)),
        'proj_b': normal(keys[10], (1, N_OUT), 0.02),
    }


def pack_params(params, pe_table):
    """Pack PyTorch-layout params into two lane/sublane-dense slabs."""
    D, hd = D_MODEL, HEAD_DIM
    scale = 1.0 / math.sqrt(hd)

    wslab = jnp.zeros((W_TOTAL_ROWS, D), jnp.float32)
    wslab = wslab.at[EMBPE_OFF:EMBPE_OFF + VOCAB].set(params['emb'])
    wslab = wslab.at[EMBPE_OFF + VOCAB:EMBPE_OFF + VOCAB + MAX_SEQ_LEN].set(
        pe_table.astype(jnp.float32))
    wslab = wslab.at[PROJ_OFF:PROJ_OFF + N_OUT].set(params['proj_w'])

    bslab = jnp.zeros((B_TOTAL_ROWS, BIAS_COLS), jnp.float32)
    bslab = bslab.at[B_PROJB, :N_OUT].set(params['proj_b'][0])

    for l in range(N_LAYERS):
        wbase = LAYER_W_OFF + l * LAYER_W_STRIDE
        bbase = LAYER_B_OFF + l * LAYER_B_STRIDE
        wl = params['in_proj_w'][l]                  # (3D, D) = [Wq; Wk; Wv]
        bl = params['in_proj_b'][l][0]               # (3D,)

        # fused QKV block (QKV_COLS rows = output columns), Wq/bq pre-scaled by 1/sqrt(hd);
        # V is laid out "wide": head h's V rows placed at its concat columns, zeros elsewhere.
        qkv_rows = jnp.zeros((QKV_COLS, D), jnp.float32)
        qkv_bias = jnp.zeros((QKV_COLS,), jnp.float32)
        for h in range(N_HEAD):
            wq = wl[0 * D + h * hd: 0 * D + (h + 1) * hd] * scale
            wk = wl[1 * D + h * hd: 1 * D + (h + 1) * hd]
            wv = wl[2 * D + h * hd: 2 * D + (h + 1) * hd]
            bq = bl[0 * D + h * hd: 0 * D + (h + 1) * hd] * scale
            bk = bl[1 * D + h * hd: 1 * D + (h + 1) * hd]
            bv = bl[2 * D + h * hd: 2 * D + (h + 1) * hd]
            q_off = h * hd
            k_off = N_HEAD * hd + h * hd
            v_off = 2 * N_HEAD * hd + h * D + h * hd   # inside the 4-wide block for head h
            qkv_rows = qkv_rows.at[q_off:q_off + hd].set(wq)
            qkv_rows = qkv_rows.at[k_off:k_off + hd].set(wk)
            qkv_rows = qkv_rows.at[v_off:v_off + hd].set(wv)
            qkv_bias = qkv_bias.at[q_off:q_off + hd].set(bq)
            qkv_bias = qkv_bias.at[k_off:k_off + hd].set(bk)
            qkv_bias = qkv_bias.at[v_off:v_off + hd].set(bv)
        wslab = wslab.at[wbase + W_QKV:wbase + W_QKV + QKV_COLS].set(qkv_rows)
        bslab = bslab.at[bbase + B_QKV, :QKV_COLS].set(qkv_bias)

        wslab = wslab.at[wbase + W_WOT:wbase + W_WOT + D].set(params['out_proj_w'][l].T)
        wslab = wslab.at[wbase + W_FF1:wbase + W_FF1 + D_FF].set(params['ff1_w'][l])
        wslab = wslab.at[wbase + W_FF2T:wbase + W_FF2T + D_FF].set(params['ff2_w'][l].T)

        bslab = bslab.at[bbase + B_OUTB, :D].set(params['out_proj_b'][l][0])
        bslab = bslab.at[bbase + B_LN1W, :D].set(params['ln1_w'][l][0])
        bslab = bslab.at[bbase + B_LN1B, :D].set(params['ln1_b'][l][0])
        bslab = bslab.at[bbase + B_LN2W, :D].set(params['ln2_w'][l][0])
        bslab = bslab.at[bbase + B_LN2B, :D].set(params['ln2_b'][l][0])
        bslab = bslab.at[bbase + B_FF1, :D_FF].set(params['ff1_b'][l][0])
        bslab = bslab.at[bbase + B_FF2, :D].set(params['ff2_b'][l][0])
    return wslab, bslab


def make_const_slab(batch, seq):
    """Host-side (numpy) constants: additive same-batch mask + mean-pool matrix."""
    bs = batch * seq
    pool_off = _round_up(bs, 8)
    rows = _round_up(pool_off + batch, 8)
    c = np.zeros((rows, BIAS_COLS), np.float32)
    rb = np.arange(bs) // seq
    c[:bs, :bs] = np.where(rb[:, None] == rb[None, :], 0.0, NEG_INF)
    for b in range(batch):
        c[pool_off + b, b * seq:(b + 1) * seq] = 1.0 / seq
    return jnp.asarray(c)


def transformer_encoder(src, wslab, bslab):
    """src: int32 (B, S) token ids -> (B, 50) float32 logits."""
    B, S = src.shape
    bs = B * S
    # column 0 = token id, column 1 = VOCAB + position (row of the PE table)
    pos = np.asarray(VOCAB + (np.arange(bs) % S), np.int32).reshape(bs, 1)
    ids2 = jnp.concatenate(
        [src.reshape(bs, 1).astype(jnp.int32), jnp.asarray(pos)], axis=1)
    cslab = make_const_slab(B, S)

    vmem = pl.BlockSpec(memory_space=pltpu.MemorySpace.VMEM)
    kernel = functools.partial(encoder_kernel, batch=B, seq=S)
    # NOTE: at non-toy batch sizes, add a leading batch grid axis with
    # compiler_params=pltpu.CompilerParams(dimension_semantics=("parallel",))
    # (2 TCs on v7x) and per-tile (S, S) scores; gridless is optimal here.
    out = pl.pallas_call(
        kernel,
        out_shape=jax.ShapeDtypeStruct((B, N_OUT_PAD), jnp.float32),
        in_specs=[vmem, vmem, vmem, vmem],
        out_specs=vmem,
    )(ids2, wslab, bslab, cslab)
    return out[:, :N_OUT]


# ---- pure-JAX reference (mirrors nn.TransformerEncoder, eval mode) ----------
def _ref_ln(x, w, b):
    mu = jnp.mean(x, axis=-1, keepdims=True)
    var = jnp.mean(jnp.square(x - mu), axis=-1, keepdims=True)
    return (x - mu) * jax.lax.rsqrt(var + LN_EPS) * w + b


def reference_forward(src, params, pe_table):
    B, S = src.shape
    x = jnp.take(params['emb'], src, axis=0) + pe_table[None, :S, :]
    for l in range(N_LAYERS):
        qkv = jnp.einsum('bsd,ed->bse', x, params['in_proj_w'][l]) \
            + params['in_proj_b'][l][0]
        q, k, v = jnp.split(qkv, 3, axis=-1)

        def heads(t):
            return t.reshape(B, S, N_HEAD, HEAD_DIM).transpose(0, 2, 1, 3)

        qh, kh, vh = heads(q), heads(k), heads(v)
        s = jnp.einsum('bhqd,bhkd->bhqk', qh, kh) / math.sqrt(HEAD_DIM)
        p = jax.nn.softmax(s, axis=-1)
        o = jnp.einsum('bhqk,bhkd->bhqd', p, vh).transpose(0, 2, 1, 3)
        o = o.reshape(B, S, D_MODEL)
        attn = jnp.einsum('bsd,ed->bse', o, params['out_proj_w'][l]) \
            + params['out_proj_b'][l][0]
        x = _ref_ln(x + attn, params['ln1_w'][l][0], params['ln1_b'][l][0])
        h1 = jax.nn.relu(jnp.einsum('bsd,fd->bsf', x, params['ff1_w'][l])
                         + params['ff1_b'][l][0])
        h2 = jnp.einsum('bsf,df->bsd', h1, params['ff2_w'][l]) \
            + params['ff2_b'][l][0]
        x = _ref_ln(x + h2, params['ln2_w'][l][0], params['ln2_b'][l][0])
    pooled = jnp.mean(x, axis=1)
    return jnp.einsum('bd,od->bo', pooled, params['proj_w']) + params['proj_b'][0]


if __name__ == "__main__":
    key = jax.random.PRNGKey(0)
    k_params, k_src = jax.random.split(key)

    batch, seq = 2, 8
    params = init_params(k_params)
    pe_table = make_positional_encoding(MAX_SEQ_LEN, D_MODEL)
    wslab, bslab = pack_params(params, pe_table)
    src = jax.random.randint(k_src, (batch, seq), 0, VOCAB, dtype=jnp.int32)

    out = transformer_encoder(src, wslab, bslab)
    out = jax.block_until_ready(out)
    assert out.shape == (batch, N_OUT)
    assert bool(jnp.all(jnp.isfinite(out)))

    with jax.default_matmul_precision('highest'):
        expected = jax.block_until_ready(reference_forward(src, params, pe_table))
    assert jnp.allclose(out, expected, atol=1e-2, rtol=1e-2), \
        float(jnp.max(jnp.abs(out - expected)))

    print("KERNEL_OK")
</pallas_src>

<mosaic_0001>
module attributes {stable_mosaic.version = 11 : i64} {
  func.func @encoder_kernel(%arg0: memref<16x2xi32, #tpu.memory_space<vmem>>, %arg1: memref<520x4xf32, #tpu.memory_space<vmem>>, %arg2: memref<32x128xf32, #tpu.memory_space<vmem>>, %arg3: memref<24x128xf32, #tpu.memory_space<vmem>>, %arg4: memref<2x128xf32, #tpu.memory_space<vmem>>) attributes {dimension_semantics = [], scalar_prefetch = 0 : i64, scratch_operands = 0 : i64, tpu.core_type = #tpu.core_type<tc>} {
    %c0 = arith.constant 0 : index
    %c0_0 = arith.constant 0 : index
    %0 = vector.load %arg0[%c0, %c0_0] : memref<16x2xi32, #tpu.memory_space<vmem>>, vector<16x2xi32>
    %1 = tpu.iota {dimensions = array<i32: 1>} : vector<16x128xi32>
    %2 = vector.extract_strided_slice %0 {offsets = [0, 0], sizes = [16, 1], strides = [1, 1]} : vector<16x2xi32> to vector<16x1xi32>
    %3 = vector.broadcast %2 : vector<16x1xi32> to vector<16x128xi32>
    %4 = arith.cmpi eq, %1, %3 : vector<16x128xi32>
    %5 = vector.extract_strided_slice %0 {offsets = [0, 1], sizes = [16, 1], strides = [1, 1]} : vector<16x2xi32> to vector<16x1xi32>
    %6 = vector.broadcast %5 : vector<16x1xi32> to vector<16x128xi32>
    %7 = arith.cmpi eq, %1, %6 : vector<16x128xi32>
    %8 = arith.ori %4, %7 : vector<16x128xi1>
    %9 = arith.extui %8 : vector<16x128xi1> to vector<16x128xi32>
    %10 = arith.sitofp %9 : vector<16x128xi32> to vector<16x128xf32>
    %c0_1 = arith.constant 0 : index
    %c0_2 = arith.constant 0 : index
    %11 = vector.load %arg1[%c0_1, %c0_2] : memref<520x4xf32, #tpu.memory_space<vmem>>, vector<128x4xf32>
    %cst = arith.constant dense<0.000000e+00> : vector<16x4xf32>
    %12 = tpu.matmul %10, %11, %cst {dimension_numbers = #tpu.dot_dimension_numbers<[1], [0], [0], [1], [0, 0, 1, 1], [], []>} : vector<16x128xf32>, vector<128x4xf32>, vector<16x4xf32> -> vector<16x4xf32>
    %c0_3 = arith.constant 0 : index
    %c0_4 = arith.constant 0 : index
    %13 = vector.load %arg3[%c0_3, %c0_4] : memref<24x128xf32, #tpu.memory_space<vmem>>, vector<16x16xf32>
    %c256 = arith.constant 256 : index
    %c0_5 = arith.constant 0 : index
    %14 = vector.load %arg1[%c256, %c0_5] : memref<520x4xf32, #tpu.memory_space<vmem>>, vector<16x4xf32>
    %cst_6 = arith.constant dense<0.000000e+00> : vector<16x16xf32>
    %15 = tpu.matmul %12, %14, %cst_6 {dimension_numbers = #tpu.dot_dimension_numbers<[1], [1], [0], [0], [0, 0, 1, 0], [], []>} : vector<16x4xf32>, vector<16x4xf32>, vector<16x16xf32> -> vector<16x16xf32>
    %c8 = arith.constant 8 : index
    %c0_7 = arith.constant 0 : index
    %16 = vector.load %arg2[%c8, %c0_7] : memref<32x128xf32, #tpu.memory_space<vmem>>, vector<1x16xf32>
    %17 = vector.broadcast %16 : vector<1x16xf32> to vector<16x16xf32>
    %18 = arith.addf %15, %17 : vector<16x16xf32>
    %cst_8 = arith.constant 0.000000e+00 : f32
    %19 = vector.broadcast %cst_8 : f32 to vector<16x4xf32>
    %20 = vector.extract_strided_slice %18 {offsets = [0, 0], sizes = [16, 2], strides = [1, 1]} : vector<16x16xf32> to vector<16x2xf32>
    %21 = vector.extract_strided_slice %18 {offsets = [0, 4], sizes = [16, 2], strides = [1, 1]} : vector<16x16xf32> to vector<16x2xf32>
    %22 = vector.extract_strided_slice %18 {offsets = [0, 8], sizes = [16, 4], strides = [1, 1]} : vector<16x16xf32> to vector<16x4xf32>
    %cst_9 = arith.constant dense<0.000000e+00> : vector<16x16xf32>
    %23 = tpu.matmul %20, %21, %cst_9 {dimension_numbers = #tpu.dot_dimension_numbers<[1], [1], [0], [0], [0, 0, 1, 0], [], []>} : vector<16x2xf32>, vector<16x2xf32>, vector<16x16xf32> -> vector<16x16xf32>
    %24 = arith.addf %23, %13 : vector<16x16xf32>
    %cst_10 = arith.constant dense<0xFF800000> : vector<16xf32>
    %25 = vector.multi_reduction <maximumf>, %24, %cst_10 [1] : vector<16x16xf32> to vector<16xf32>
    %26 = vector.shape_cast %25 : vector<16xf32> to vector<16x1xf32>
    %27 = vector.broadcast %26 : vector<16x1xf32> to vector<16x16xf32>
    %28 = arith.subf %24, %27 : vector<16x16xf32>
    %29 = math.exp %28 : vector<16x16xf32>
    %cst_11 = arith.constant dense<0.000000e+00> : vector<16xf32>
    %30 = vector.multi_reduction <add>, %29, %cst_11 [1] : vector<16x16xf32> to vector<16xf32>
    %31 = vector.shape_cast %30 : vector<16xf32> to vector<16x1xf32>
    %32 = tpu.reciprocal %31 {approx = true} : vector<16x1xf32> -> vector<16x1xf32>
    %33 = vector.broadcast %32 : vector<16x1xf32> to vector<16x16xf32>
    %34 = arith.mulf %29, %33 : vector<16x16xf32>
    %cst_12 = arith.constant dense<0.000000e+00> : vector<16x4xf32>
    %35 = tpu.matmul %34, %22, %cst_12 {dimension_numbers = #tpu.dot_dimension_numbers<[1], [0], [0], [1], [0, 0, 1, 1], [], []>} : vector<16x16xf32>, vector<16x4xf32>, vector<16x4xf32> -> vector<16x4xf32>
    %36 = arith.addf %19, %35 : vector<16x4xf32>
    %37 = vector.extract_strided_slice %18 {offsets = [0, 2], sizes = [16, 2], strides = [1, 1]} : vector<16x16xf32> to vector<16x2xf32>
    %38 = vector.extract_strided_slice %18 {offsets = [0, 6], sizes = [16, 2], strides = [1, 1]} : vector<16x16xf32> to vector<16x2xf32>
    %39 = vector.extract_strided_slice %18 {offsets = [0, 12], sizes = [16, 4], strides = [1, 1]} : vector<16x16xf32> to vector<16x4xf32>
    %cst_13 = arith.constant dense<0.000000e+00> : vector<16x16xf32>
    %40 = tpu.matmul %37, %38, %cst_13 {dimension_numbers = #tpu.dot_dimension_numbers<[1], [1], [0], [0], [0, 0, 1, 0], [], []>} : vector<16x2xf32>, vector<16x2xf32>, vector<16x16xf32> -> vector<16x16xf32>
    %41 = arith.addf %40, %13 : vector<16x16xf32>
    %cst_14 = arith.constant dense<0xFF800000> : vector<16xf32>
    %42 = vector.multi_reduction <maximumf>, %41, %cst_14 [1] : vector<16x16xf32> to vector<16xf32>
    %43 = vector.shape_cast %42 : vector<16xf32> to vector<16x1xf32>
    %44 = vector.broadcast %43 : vector<16x1xf32> to vector<16x16xf32>
    %45 = arith.subf %41, %44 : vector<16x16xf32>
    %46 = math.exp %45 : vector<16x16xf32>
    %cst_15 = arith.constant dense<0.000000e+00> : vector<16xf32>
    %47 = vector.multi_reduction <add>, %46, %cst_15 [1] : vector<16x16xf32> to vector<16xf32>
    %48 = vector.shape_cast %47 : vector<16xf32> to vector<16x1xf32>
    %49 = tpu.reciprocal %48 {approx = true} : vector<16x1xf32> -> vector<16x1xf32>
    %50 = vector.broadcast %49 : vector<16x1xf32> to vector<16x16xf32>
    %51 = arith.mulf %46, %50 : vector<16x16xf32>
    %cst_16 = arith.constant dense<0.000000e+00> : vector<16x4xf32>
    %52 = tpu.matmul %51, %39, %cst_16 {dimension_numbers = #tpu.dot_dimension_numbers<[1], [0], [0], [1], [0, 0, 1, 1], [], []>} : vector<16x16xf32>, vector<16x4xf32>, vector<16x4xf32> -> vector<16x4xf32>
    %53 = arith.addf %36, %52 : vector<16x4xf32>
    %c272 = arith.constant 272 : index
    %c0_17 = arith.constant 0 : index
    %54 = vector.load %arg1[%c272, %c0_17] : memref<520x4xf32, #tpu.memory_space<vmem>>, vector<4x4xf32>
    %cst_18 = arith.constant dense<0.000000e+00> : vector<16x4xf32>
    %55 = tpu.matmul %53, %54, %cst_18 {dimension_numbers = #tpu.dot_dimension_numbers<[1], [0], [0], [1], [0, 0, 1, 1], [], []>} : vector<16x4xf32>, vector<4x4xf32>, vector<16x4xf32> -> vector<16x4xf32>
    %c9 = arith.constant 9 : index
    %c0_19 = arith.constant 0 : index
    %56 = vector.load %arg2[%c9, %c0_19] : memref<32x128xf32, #tpu.memory_space<vmem>>, vector<1x4xf32>
    %57 = vector.broadcast %56 : vector<1x4xf32> to vector<16x4xf32>
    %58 = arith.addf %55, %57 : vector<16x4xf32>
    %59 = arith.addf %12, %58 : vector<16x4xf32>
    %c10 = arith.constant 10 : index
    %c0_20 = arith.constant 0 : index
    %60 = vector.load %arg2[%c10, %c0_20] : memref<32x128xf32, #tpu.memory_space<vmem>>, vector<1x4xf32>
    %c11 = arith.constant 11 : index
    %c0_21 = arith.constant 0 : index
    %61 = vector.load %arg2[%c11, %c0_21] : memref<32x128xf32, #tpu.memory_space<vmem>>, vector<1x4xf32>
    %cst_22 = arith.constant dense<0.000000e+00> : vector<16xf32>
    %62 = vector.multi_reduction <add>, %59, %cst_22 [1] : vector<16x4xf32> to vector<16xf32>
    %63 = vector.shape_cast %62 : vector<16xf32> to vector<16x1xf32>
    %cst_23 = arith.constant 4.000000e+00 : f32
    %64 = vector.broadcast %cst_23 : f32 to vector<16x1xf32>
    %65 = arith.divf %63, %64 : vector<16x1xf32>
    %66 = vector.broadcast %65 : vector<16x1xf32> to vector<16x4xf32>
    %67 = arith.subf %59, %66 : vector<16x4xf32>
    %68 = arith.mulf %67, %67 : vector<16x4xf32>
    %cst_24 = arith.constant dense<0.000000e+00> : vector<16xf32>
    %69 = vector.multi_reduction <add>, %68, %cst_24 [1] : vector<16x4xf32> to vector<16xf32>
    %70 = vector.shape_cast %69 : vector<16xf32> to vector<16x1xf32>
    %cst_25 = arith.constant 4.000000e+00 : f32
    %71 = vector.broadcast %cst_25 : f32 to vector<16x1xf32>
    %72 = arith.divf %70, %71 : vector<16x1xf32>
    %73 = vector.broadcast %65 : vector<16x1xf32> to vector<16x4xf32>
    %74 = arith.subf %59, %73 : vector<16x4xf32>
    %cst_26 = arith.constant 9.99999974E-6 : f32
    %75 = vector.broadcast %cst_26 : f32 to vector<16x1xf32>
    %76 = arith.addf %72, %75 : vector<16x1xf32>
    %77 = math.rsqrt %76 : vector<16x1xf32>
    %78 = vector.broadcast %77 : vector<16x1xf32> to vector<16x4xf32>
    %79 = arith.mulf %74, %78 : vector<16x4xf32>
    %80 = vector.broadcast %60 : vector<1x4xf32> to vector<16x4xf32>
    %81 = arith.mulf %79, %80 : vector<16x4xf32>
    %82 = vector.broadcast %61 : vector<1x4xf32> to vector<16x4xf32>
    %83 = arith.addf %81, %82 : vector<16x4xf32>
    %c280 = arith.constant 280 : index
    %c0_27 = arith.constant 0 : index
    %84 = vector.load %arg1[%c280, %c0_27] : memref<520x4xf32, #tpu.memory_space<vmem>>, vector<32x4xf32>
    %cst_28 = arith.constant dense<0.000000e+00> : vector<16x32xf32>
    %85 = tpu.matmul %83, %84, %cst_28 {dimension_numbers = #tpu.dot_dimension_numbers<[1], [1], [0], [0], [0, 0, 1, 0], [], []>} : vector<16x4xf32>, vector<32x4xf32>, vector<16x32xf32> -> vector<16x32xf32>
    %c14 = arith.constant 14 : index
    %c0_29 = arith.constant 0 : index
    %86 = vector.load %arg2[%c14, %c0_29] : memref<32x128xf32, #tpu.memory_space<vmem>>, vector<1x32xf32>
    %87 = vector.broadcast %86 : vector<1x32xf32> to vector<16x32xf32>
    %88 = arith.addf %85, %87 : vector<16x32xf32>
    %cst_30 = arith.constant 0.000000e+00 : f32
    %89 = vector.broadcast %cst_30 : f32 to vector<16x32xf32>
    %90 = arith.maximumf %88, %89 : vector<16x32xf32>
    %c312 = arith.constant 312 : index
    %c0_31 = arith.constant 0 : index
    %91 = vector.load %arg1[%c312, %c0_31] : memref<520x4xf32, #tpu.memory_space<vmem>>, vector<32x4xf32>
    %cst_32 = arith.constant dense<0.000000e+00> : vector<16x4xf32>
    %92 = tpu.matmul %90, %91, %cst_32 {dimension_numbers = #tpu.dot_dimension_numbers<[1], [0], [0], [1], [0, 0, 1, 1], [], []>} : vector<16x32xf32>, vector<32x4xf32>, vector<16x4xf32> -> vector<16x4xf32>
    %c15 = arith.constant 15 : index
    %c0_33 = arith.constant 0 : index
    %93 = vector.load %arg2[%c15, %c0_33] : memref<32x128xf32, #tpu.memory_space<vmem>>, vector<1x4xf32>
    %94 = vector.broadcast %93 : vector<1x4xf32> to vector<16x4xf32>
    %95 = arith.addf %92, %94 : vector<16x4xf32>
    %96 = arith.addf %83, %95 : vector<16x4xf32>
    %c12 = arith.constant 12 : index
    %c0_34 = arith.constant 0 : index
    %97 = vector.load %arg2[%c12, %c0_34] : memref<32x128xf32, #tpu.memory_space<vmem>>, vector<1x4xf32>
    %c13 = arith.constant 13 : index
    %c0_35 = arith.constant 0 : index
    %98 = vector.load %arg2[%c13, %c0_35] : memref<32x128xf32, #tpu.memory_space<vmem>>, vector<1x4xf32>
    %cst_36 = arith.constant dense<0.000000e+00> : vector<16xf32>
    %99 = vector.multi_reduction <add>, %96, %cst_36 [1] : vector<16x4xf32> to vector<16xf32>
    %100 = vector.shape_cast %99 : vector<16xf32> to vector<16x1xf32>
    %cst_37 = arith.constant 4.000000e+00 : f32
    %101 = vector.broadcast %cst_37 : f32 to vector<16x1xf32>
    %102 = arith.divf %100, %101 : vector<16x1xf32>
    %103 = vector.broadcast %102 : vector<16x1xf32> to vector<16x4xf32>
    %104 = arith.subf %96, %103 : vector<16x4xf32>
    %105 = arith.mulf %104, %104 : vector<16x4xf32>
    %cst_38 = arith.constant dense<0.000000e+00> : vector<16xf32>
    %106 = vector.multi_reduction <add>, %105, %cst_38 [1] : vector<16x4xf32> to vector<16xf32>
    %107 = vector.shape_cast %106 : vector<16xf32> to vector<16x1xf32>
    %cst_39 = arith.constant 4.000000e+00 : f32
    %108 = vector.broadcast %cst_39 : f32 to vector<16x1xf32>
    %109 = arith.divf %107, %108 : vector<16x1xf32>
    %110 = vector.broadcast %102 : vector<16x1xf32> to vector<16x4xf32>
    %111 = arith.subf %96, %110 : vector<16x4xf32>
    %cst_40 = arith.constant 9.99999974E-6 : f32
    %112 = vector.broadcast %cst_40 : f32 to vector<16x1xf32>
    %113 = arith.addf %109, %112 : vector<16x1xf32>
    %114 = math.rsqrt %113 : vector<16x1xf32>
    %115 = vector.broadcast %114 : vector<16x1xf32> to vector<16x4xf32>
    %116 = arith.mulf %111, %115 : vector<16x4xf32>
    %117 = vector.broadcast %97 : vector<1x4xf32> to vector<16x4xf32>
    %118 = arith.mulf %116, %117 : vector<16x4xf32>
    %119 = vector.broadcast %98 : vector<1x4xf32> to vector<16x4xf32>
    %120 = arith.addf %118, %119 : vector<16x4xf32>
    %c344 = arith.constant 344 : index
    %c0_41 = arith.constant 0 : index
    %121 = vector.load %arg1[%c344, %c0_41] : memref<520x4xf32, #tpu.memory_space<vmem>>, vector<16x4xf32>
    %cst_42 = arith.constant dense<0.000000e+00> : vector<16x16xf32>
    %122 = tpu.matmul %120, %121, %cst_42 {dimension_numbers = #tpu.dot_dimension_numbers<[1], [1], [0], [0], [0, 0, 1, 0], [], []>} : vector<16x4xf32>, vector<16x4xf32>, vector<16x16xf32> -> vector<16x16xf32>
    %c16 = arith.constant 16 : index
    %c0_43 = arith.constant 0 : index
    %123 = vector.load %arg2[%c16, %c0_43] : memref<32x128xf32, #tpu.memory_space<vmem>>, vector<1x16xf32>
    %124 = vector.broadcast %123 : vector<1x16xf32> to vector<16x16xf32>
    %125 = arith.addf %122, %124 : vector<16x16xf32>
    %cst_44 = arith.constant 0.000000e+00 : f32
    %126 = vector.broadcast %cst_44 : f32 to vector<16x4xf32>
    %127 = vector.extract_strided_slice %125 {offsets = [0, 0], sizes = [16, 2], strides = [1, 1]} : vector<16x16xf32> to vector<16x2xf32>
    %128 = vector.extract_strided_slice %125 {offsets = [0, 4], sizes = [16, 2], strides = [1, 1]} : vector<16x16xf32> to vector<16x2xf32>
    %129 = vector.extract_strided_slice %125 {offsets = [0, 8], sizes = [16, 4], strides = [1, 1]} : vector<16x16xf32> to vector<16x4xf32>
    %cst_45 = arith.constant dense<0.000000e+00> : vector<16x16xf32>
    %130 = tpu.matmul %127, %128, %cst_45 {dimension_numbers = #tpu.dot_dimension_numbers<[1], [1], [0], [0], [0, 0, 1, 0], [], []>} : vector<16x2xf32>, vector<16x2xf32>, vector<16x16xf32> -> vector<16x16xf32>
    %131 = arith.addf %130, %13 : vector<16x16xf32>
    %cst_46 = arith.constant dense<0xFF800000> : vector<16xf32>
    %132 = vector.multi_reduction <maximumf>, %131, %cst_46 [1] : vector<16x16xf32> to vector<16xf32>
    %133 = vector.shape_cast %132 : vector<16xf32> to vector<16x1xf32>
    %134 = vector.broadcast %133 : vector<16x1xf32> to vector<16x16xf32>
    %135 = arith.subf %131, %134 : vector<16x16xf32>
    %136 = math.exp %135 : vector<16x16xf32>
    %cst_47 = arith.constant dense<0.000000e+00> : vector<16xf32>
    %137 = vector.multi_reduction <add>, %136, %cst_47 [1] : vector<16x16xf32> to vector<16xf32>
    %138 = vector.shape_cast %137 : vector<16xf32> to vector<16x1xf32>
    %139 = tpu.reciprocal %138 {approx = true} : vector<16x1xf32> -> vector<16x1xf32>
    %140 = vector.broadcast %139 : vector<16x1xf32> to vector<16x16xf32>
    %141 = arith.mulf %136, %140 : vector<16x16xf32>
    %cst_48 = arith.constant dense<0.000000e+00> : vector<16x4xf32>
    %142 = tpu.matmul %141, %129, %cst_48 {dimension_numbers = #tpu.dot_dimension_numbers<[1], [0], [0], [1], [0, 0, 1, 1], [], []>} : vector<16x16xf32>, vector<16x4xf32>, vector<16x4xf32> -> vector<16x4xf32>
    %143 = arith.addf %126, %142 : vector<16x4xf32>
    %144 = vector.extract_strided_slice %125 {offsets = [0, 2], sizes = [16, 2], strides = [1, 1]} : vector<16x16xf32> to vector<16x2xf32>
    %145 = vector.extract_strided_slice %125 {offsets = [0, 6], sizes = [16, 2], strides = [1, 1]} : vector<16x16xf32> to vector<16x2xf32>
    %146 = vector.extract_strided_slice %125 {offsets = [0, 12], sizes = [16, 4], strides = [1, 1]} : vector<16x16xf32> to vector<16x4xf32>
    %cst_49 = arith.constant dense<0.000000e+00> : vector<16x16xf32>
    %147 = tpu.matmul %144, %145, %cst_49 {dimension_numbers = #tpu.dot_dimension_numbers<[1], [1], [0], [0], [0, 0, 1, 0], [], []>} : vector<16x2xf32>, vector<16x2xf32>, vector<16x16xf32> -> vector<16x16xf32>
    %148 = arith.addf %147, %13 : vector<16x16xf32>
    %cst_50 = arith.constant dense<0xFF800000> : vector<16xf32>
    %149 = vector.multi_reduction <maximumf>, %148, %cst_50 [1] : vector<16x16xf32> to vector<16xf32>
    %150 = vector.shape_cast %149 : vector<16xf32> to vector<16x1xf32>
    %151 = vector.broadcast %150 : vector<16x1xf32> to vector<16x16xf32>
    %152 = arith.subf %148, %151 : vector<16x16xf32>
    %153 = math.exp %152 : vector<16x16xf32>
    %cst_51 = arith.constant dense<0.000000e+00> : vector<16xf32>
    %154 = vector.multi_reduction <add>, %153, %cst_51 [1] : vector<16x16xf32> to vector<16xf32>
    %155 = vector.shape_cast %154 : vector<16xf32> to vector<16x1xf32>
    %156 = tpu.reciprocal %155 {approx = true} : vector<16x1xf32> -> vector<16x1xf32>
    %157 = vector.broadcast %156 : vector<16x1xf32> to vector<16x16xf32>
    %158 = arith.mulf %153, %157 : vector<16x16xf32>
    %cst_52 = arith.constant dense<0.000000e+00> : vector<16x4xf32>
    %159 = tpu.matmul %158, %146, %cst_52 {dimension_numbers = #tpu.dot_dimension_numbers<[1], [0], [0], [1], [0, 0, 1, 1], [], []>} : vector<16x16xf32>, vector<16x4xf32>, vector<16x4xf32> -> vector<16x4xf32>
    %160 = arith.addf %143, %159 : vector<16x4xf32>
    %c360 = arith.constant 360 : index
    %c0_53 = arith.constant 0 : index
    %161 = vector.load %arg1[%c360, %c0_53] : memref<520x4xf32, #tpu.memory_space<vmem>>, vector<4x4xf32>
    %cst_54 = arith.constant dense<0.000000e+00> : vector<16x4xf32>
    %162 = tpu.matmul %160, %161, %cst_54 {dimension_numbers = #tpu.dot_dimension_numbers<[1], [0], [0], [1], [0, 0, 1, 1], [], []>} : vector<16x4xf32>, vector<4x4xf32>, vector<16x4xf32> -> vector<16x4xf32>
    %c17 = arith.constant 17 : index
    %c0_55 = arith.constant 0 : index
    %163 = vector.load %arg2[%c17, %c0_55] : memref<32x128xf32, #tpu.memory_space<vmem>>, vector<1x4xf32>
    %164 = vector.broadcast %163 : vector<1x4xf32> to vector<16x4xf32>
    %165 = arith.addf %162, %164 : vector<16x4xf32>
    %166 = arith.addf %120, %165 : vector<16x4xf32>
    %c18 = arith.constant 18 : index
    %c0_56 = arith.constant 0 : index
    %167 = vector.load %arg2[%c18, %c0_56] : memref<32x128xf32, #tpu.memory_space<vmem>>, vector<1x4xf32>
    %c19 = arith.constant 19 : index
    %c0_57 = arith.constant 0 : index
    %168 = vector.load %arg2[%c19, %c0_57] : memref<32x128xf32, #tpu.memory_space<vmem>>, vector<1x4xf32>
    %cst_58 = arith.constant dense<0.000000e+00> : vector<16xf32>
    %169 = vector.multi_reduction <add>, %166, %cst_58 [1] : vector<16x4xf32> to vector<16xf32>
    %170 = vector.shape_cast %169 : vector<16xf32> to vector<16x1xf32>
    %cst_59 = arith.constant 4.000000e+00 : f32
    %171 = vector.broadcast %cst_59 : f32 to vector<16x1xf32>
    %172 = arith.divf %170, %171 : vector<16x1xf32>
    %173 = vector.broadcast %172 : vector<16x1xf32> to vector<16x4xf32>
    %174 = arith.subf %166, %173 : vector<16x4xf32>
    %175 = arith.mulf %174, %174 : vector<16x4xf32>
    %cst_60 = arith.constant dense<0.000000e+00> : vector<16xf32>
    %176 = vector.multi_reduction <add>, %175, %cst_60 [1] : vector<16x4xf32> to vector<16xf32>
    %177 = vector.shape_cast %176 : vector<16xf32> to vector<16x1xf32>
    %cst_61 = arith.constant 4.000000e+00 : f32
    %178 = vector.broadcast %cst_61 : f32 to vector<16x1xf32>
    %179 = arith.divf %177, %178 : vector<16x1xf32>
    %180 = vector.broadcast %172 : vector<16x1xf32> to vector<16x4xf32>
    %181 = arith.subf %166, %180 : vector<16x4xf32>
    %cst_62 = arith.constant 9.99999974E-6 : f32
    %182 = vector.broadcast %cst_62 : f32 to vector<16x1xf32>
    %183 = arith.addf %179, %182 : vector<16x1xf32>
    %184 = math.rsqrt %183 : vector<16x1xf32>
    %185 = vector.broadcast %184 : vector<16x1xf32> to vector<16x4xf32>
    %186 = arith.mulf %181, %185 : vector<16x4xf32>
    %187 = vector.broadcast %167 : vector<1x4xf32> to vector<16x4xf32>
    %188 = arith.mulf %186, %187 : vector<16x4xf32>
    %189 = vector.broadcast %168 : vector<1x4xf32> to vector<16x4xf32>
    %190 = arith.addf %188, %189 : vector<16x4xf32>
    %c368 = arith.constant 368 : index
    %c0_63 = arith.constant 0 : index
    %191 = vector.load %arg1[%c368, %c0_63] : memref<520x4xf32, #tpu.memory_space<vmem>>, vector<32x4xf32>
    %cst_64 = arith.constant dense<0.000000e+00> : vector<16x32xf32>
    %192 = tpu.matmul %190, %191, %cst_64 {dimension_numbers = #tpu.dot_dimension_numbers<[1], [1], [0], [0], [0, 0, 1, 0], [], []>} : vector<16x4xf32>, vector<32x4xf32>, vector<16x32xf32> -> vector<16x32xf32>
    %c22 = arith.constant 22 : index
    %c0_65 = arith.constant 0 : index
    %193 = vector.load %arg2[%c22, %c0_65] : memref<32x128xf32, #tpu.memory_space<vmem>>, vector<1x32xf32>
    %194 = vector.broadcast %193 : vector<1x32xf32> to vector<16x32xf32>
    %195 = arith.addf %192, %194 : vector<16x32xf32>
    %cst_66 = arith.constant 0.000000e+00 : f32
    %196 = vector.broadcast %cst_66 : f32 to vector<16x32xf32>
    %197 = arith.maximumf %195, %196 : vector<16x32xf32>
    %c400 = arith.constant 400 : index
    %c0_67 = arith.constant 0 : index
    %198 = vector.load %arg1[%c400, %c0_67] : memref<520x4xf32, #tpu.memory_space<vmem>>, vector<32x4xf32>
    %cst_68 = arith.constant dense<0.000000e+00> : vector<16x4xf32>
    %199 = tpu.matmul %197, %198, %cst_68 {dimension_numbers = #tpu.dot_dimension_numbers<[1], [0], [0], [1], [0, 0, 1, 1], [], []>} : vector<16x32xf32>, vector<32x4xf32>, vector<16x4xf32> -> vector<16x4xf32>
    %c23 = arith.constant 23 : index
    %c0_69 = arith.constant 0 : index
    %200 = vector.load %arg2[%c23, %c0_69] : memref<32x128xf32, #tpu.memory_space<vmem>>, vector<1x4xf32>
    %201 = vector.broadcast %200 : vector<1x4xf32> to vector<16x4xf32>
    %202 = arith.addf %199, %201 : vector<16x4xf32>
    %203 = arith.addf %190, %202 : vector<16x4xf32>
    %c20 = arith.constant 20 : index
    %c0_70 = arith.constant 0 : index
    %204 = vector.load %arg2[%c20, %c0_70] : memref<32x128xf32, #tpu.memory_space<vmem>>, vector<1x4xf32>
    %c21 = arith.constant 21 : index
    %c0_71 = arith.constant 0 : index
    %205 = vector.load %arg2[%c21, %c0_71] : memref<32x128xf32, #tpu.memory_space<vmem>>, vector<1x4xf32>
    %cst_72 = arith.constant dense<0.000000e+00> : vector<16xf32>
    %206 = vector.multi_reduction <add>, %203, %cst_72 [1] : vector<16x4xf32> to vector<16xf32>
    %207 = vector.shape_cast %206 : vector<16xf32> to vector<16x1xf32>
    %cst_73 = arith.constant 4.000000e+00 : f32
    %208 = vector.broadcast %cst_73 : f32 to vector<16x1xf32>
    %209 = arith.divf %207, %208 : vector<16x1xf32>
    %210 = vector.broadcast %209 : vector<16x1xf32> to vector<16x4xf32>
    %211 = arith.subf %203, %210 : vector<16x4xf32>
    %212 = arith.mulf %211, %211 : vector<16x4xf32>
    %cst_74 = arith.constant dense<0.000000e+00> : vector<16xf32>
    %213 = vector.multi_reduction <add>, %212, %cst_74 [1] : vector<16x4xf32> to vector<16xf32>
    %214 = vector.shape_cast %213 : vector<16xf32> to vector<16x1xf32>
    %cst_75 = arith.constant 4.000000e+00 : f32
    %215 = vector.broadcast %cst_75 : f32 to vector<16x1xf32>
    %216 = arith.divf %214, %215 : vector<16x1xf32>
    %217 = vector.broadcast %209 : vector<16x1xf32> to vector<16x4xf32>
    %218 = arith.subf %203, %217 : vector<16x4xf32>
    %cst_76 = arith.constant 9.99999974E-6 : f32
    %219 = vector.broadcast %cst_76 : f32 to vector<16x1xf32>
    %220 = arith.addf %216, %219 : vector<16x1xf32>
    %221 = math.rsqrt %220 : vector<16x1xf32>
    %222 = vector.broadcast %221 : vector<16x1xf32> to vector<16x4xf32>
    %223 = arith.mulf %218, %222 : vector<16x4xf32>
    %224 = vector.broadcast %204 : vector<1x4xf32> to vector<16x4xf32>
    %225 = arith.mulf %223, %224 : vector<16x4xf32>
    %226 = vector.broadcast %205 : vector<1x4xf32> to vector<16x4xf32>
    %227 = arith.addf %225, %226 : vector<16x4xf32>
    %c432 = arith.constant 432 : index
    %c0_77 = arith.constant 0 : index
    %228 = vector.load %arg1[%c432, %c0_77] : memref<520x4xf32, #tpu.memory_space<vmem>>, vector<16x4xf32>
    %cst_78 = arith.constant dense<0.000000e+00> : vector<16x16xf32>
    %229 = tpu.matmul %227, %228, %cst_78 {dimension_numbers = #tpu.dot_dimension_numbers<[1], [1], [0], [0], [0, 0, 1, 0], [], []>} : vector<16x4xf32>, vector<16x4xf32>, vector<16x16xf32> -> vector<16x16xf32>
    %c24 = arith.constant 24 : index
    %c0_79 = arith.constant 0 : index
    %230 = vector.load %arg2[%c24, %c0_79] : memref<32x128xf32, #tpu.memory_space<vmem>>, vector<1x16xf32>
    %231 = vector.broadcast %230 : vector<1x16xf32> to vector<16x16xf32>
    %232 = arith.addf %229, %231 : vector<16x16xf32>
    %cst_80 = arith.constant 0.000000e+00 : f32
    %233 = vector.broadcast %cst_80 : f32 to vector<16x4xf32>
    %234 = vector.extract_strided_slice %232 {offsets = [0, 0], sizes = [16, 2], strides = [1, 1]} : vector<16x16xf32> to vector<16x2xf32>
    %235 = vector.extract_strided_slice %232 {offsets = [0, 4], sizes = [16, 2], strides = [1, 1]} : vector<16x16xf32> to vector<16x2xf32>
    %236 = vector.extract_strided_slice %232 {offsets = [0, 8], sizes = [16, 4], strides = [1, 1]} : vector<16x16xf32> to vector<16x4xf32>
    %cst_81 = arith.constant dense<0.000000e+00> : vector<16x16xf32>
    %237 = tpu.matmul %234, %235, %cst_81 {dimension_numbers = #tpu.dot_dimension_numbers<[1], [1], [0], [0], [0, 0, 1, 0], [], []>} : vector<16x2xf32>, vector<16x2xf32>, vector<16x16xf32> -> vector<16x16xf32>
    %238 = arith.addf %237, %13 : vector<16x16xf32>
    %cst_82 = arith.constant dense<0xFF800000> : vector<16xf32>
    %239 = vector.multi_reduction <maximumf>, %238, %cst_82 [1] : vector<16x16xf32> to vector<16xf32>
    %240 = vector.shape_cast %239 : vector<16xf32> to vector<16x1xf32>
    %241 = vector.broadcast %240 : vector<16x1xf32> to vector<16x16xf32>
    %242 = arith.subf %238, %241 : vector<16x16xf32>
    %243 = math.exp %242 : vector<16x16xf32>
    %cst_83 = arith.constant dense<0.000000e+00> : vector<16xf32>
    %244 = vector.multi_reduction <add>, %243, %cst_83 [1] : vector<16x16xf32> to vector<16xf32>
    %245 = vector.shape_cast %244 : vector<16xf32> to vector<16x1xf32>
    %246 = tpu.reciprocal %245 {approx = true} : vector<16x1xf32> -> vector<16x1xf32>
    %247 = vector.broadcast %246 : vector<16x1xf32> to vector<16x16xf32>
    %248 = arith.mulf %243, %247 : vector<16x16xf32>
    %cst_84 = arith.constant dense<0.000000e+00> : vector<16x4xf32>
    %249 = tpu.matmul %248, %236, %cst_84 {dimension_numbers = #tpu.dot_dimension_numbers<[1], [0], [0], [1], [0, 0, 1, 1], [], []>} : vector<16x16xf32>, vector<16x4xf32>, vector<16x4xf32> -> vector<16x4xf32>
    %250 = arith.addf %233, %249 : vector<16x4xf32>
    %251 = vector.extract_strided_slice %232 {offsets = [0, 2], sizes = [16, 2], strides = [1, 1]} : vector<16x16xf32> to vector<16x2xf32>
    %252 = vector.extract_strided_slice %232 {offsets = [0, 6], sizes = [16, 2], strides = [1, 1]} : vector<16x16xf32> to vector<16x2xf32>
    %253 = vector.extract_strided_slice %232 {offsets = [0, 12], sizes = [16, 4], strides = [1, 1]} : vector<16x16xf32> to vector<16x4xf32>
    %cst_85 = arith.constant dense<0.000000e+00> : vector<16x16xf32>
    %254 = tpu.matmul %251, %252, %cst_85 {dimension_numbers = #tpu.dot_dimension_numbers<[1], [1], [0], [0], [0, 0, 1, 0], [], []>} : vector<16x2xf32>, vector<16x2xf32>, vector<16x16xf32> -> vector<16x16xf32>
    %255 = arith.addf %254, %13 : vector<16x16xf32>
    %cst_86 = arith.constant dense<0xFF800000> : vector<16xf32>
    %256 = vector.multi_reduction <maximumf>, %255, %cst_86 [1] : vector<16x16xf32> to vector<16xf32>
    %257 = vector.shape_cast %256 : vector<16xf32> to vector<16x1xf32>
    %258 = vector.broadcast %257 : vector<16x1xf32> to vector<16x16xf32>
    %259 = arith.subf %255, %258 : vector<16x16xf32>
    %260 = math.exp %259 : vector<16x16xf32>
    %cst_87 = arith.constant dense<0.000000e+00> : vector<16xf32>
    %261 = vector.multi_reduction <add>, %260, %cst_87 [1] : vector<16x16xf32> to vector<16xf32>
    %262 = vector.shape_cast %261 : vector<16xf32> to vector<16x1xf32>
    %263 = tpu.reciprocal %262 {approx = true} : vector<16x1xf32> -> vector<16x1xf32>
    %264 = vector.broadcast %263 : vector<16x1xf32> to vector<16x16xf32>
    %265 = arith.mulf %260, %264 : vector<16x16xf32>
    %cst_88 = arith.constant dense<0.000000e+00> : vector<16x4xf32>
    %266 = tpu.matmul %265, %253, %cst_88 {dimension_numbers = #tpu.dot_dimension_numbers<[1], [0], [0], [1], [0, 0, 1, 1], [], []>} : vector<16x16xf32>, vector<16x4xf32>, vector<16x4xf32> -> vector<16x4xf32>
    %267 = arith.addf %250, %266 : vector<16x4xf32>
    %c448 = arith.constant 448 : index
    %c0_89 = arith.constant 0 : index
    %268 = vector.load %arg1[%c448, %c0_89] : memref<520x4xf32, #tpu.memory_space<vmem>>, vector<4x4xf32>
    %cst_90 = arith.constant dense<0.000000e+00> : vector<16x4xf32>
    %269 = tpu.matmul %267, %268, %cst_90 {dimension_numbers = #tpu.dot_dimension_numbers<[1], [0], [0], [1], [0, 0, 1, 1], [], []>} : vector<16x4xf32>, vector<4x4xf32>, vector<16x4xf32> -> vector<16x4xf32>
    %c25 = arith.constant 25 : index
    %c0_91 = arith.constant 0 : index
    %270 = vector.load %arg2[%c25, %c0_91] : memref<32x128xf32, #tpu.memory_space<vmem>>, vector<1x4xf32>
    %271 = vector.broadcast %270 : vector<1x4xf32> to vector<16x4xf32>
    %272 = arith.addf %269, %271 : vector<16x4xf32>
    %273 = arith.addf %227, %272 : vector<16x4xf32>
    %c26 = arith.constant 26 : index
    %c0_92 = arith.constant 0 : index
    %274 = vector.load %arg2[%c26, %c0_92] : memref<32x128xf32, #tpu.memory_space<vmem>>, vector<1x4xf32>
    %c27 = arith.constant 27 : index
    %c0_93 = arith.constant 0 : index
    %275 = vector.load %arg2[%c27, %c0_93] : memref<32x128xf32, #tpu.memory_space<vmem>>, vector<1x4xf32>
    %cst_94 = arith.constant dense<0.000000e+00> : vector<16xf32>
    %276 = vector.multi_reduction <add>, %273, %cst_94 [1] : vector<16x4xf32> to vector<16xf32>
    %277 = vector.shape_cast %276 : vector<16xf32> to vector<16x1xf32>
    %cst_95 = arith.constant 4.000000e+00 : f32
    %278 = vector.broadcast %cst_95 : f32 to vector<16x1xf32>
    %279 = arith.divf %277, %278 : vector<16x1xf32>
    %280 = vector.broadcast %279 : vector<16x1xf32> to vector<16x4xf32>
    %281 = arith.subf %273, %280 : vector<16x4xf32>
    %282 = arith.mulf %281, %281 : vector<16x4xf32>
    %cst_96 = arith.constant dense<0.000000e+00> : vector<16xf32>
    %283 = vector.multi_reduction <add>, %282, %cst_96 [1] : vector<16x4xf32> to vector<16xf32>
    %284 = vector.shape_cast %283 : vector<16xf32> to vector<16x1xf32>
    %cst_97 = arith.constant 4.000000e+00 : f32
    %285 = vector.broadcast %cst_97 : f32 to vector<16x1xf32>
    %286 = arith.divf %284, %285 : vector<16x1xf32>
    %287 = vector.broadcast %279 : vector<16x1xf32> to vector<16x4xf32>
    %288 = arith.subf %273, %287 : vector<16x4xf32>
    %cst_98 = arith.constant 9.99999974E-6 : f32
    %289 = vector.broadcast %cst_98 : f32 to vector<16x1xf32>
    %290 = arith.addf %286, %289 : vector<16x1xf32>
    %291 = math.rsqrt %290 : vector<16x1xf32>
    %292 = vector.broadcast %291 : vector<16x1xf32> to vector<16x4xf32>
    %293 = arith.mulf %288, %292 : vector<16x4xf32>
    %294 = vector.broadcast %274 : vector<1x4xf32> to vector<16x4xf32>
    %295 = arith.mulf %293, %294 : vector<16x4xf32>
    %296 = vector.broadcast %275 : vector<1x4xf32> to vector<16x4xf32>
    %297 = arith.addf %295, %296 : vector<16x4xf32>
    %c456 = arith.constant 456 : index
    %c0_99 = arith.constant 0 : index
    %298 = vector.load %arg1[%c456, %c0_99] : memref<520x4xf32, #tpu.memory_space<vmem>>, vector<32x4xf32>
    %cst_100 = arith.constant dense<0.000000e+00> : vector<16x32xf32>
    %299 = tpu.matmul %297, %298, %cst_100 {dimension_numbers = #tpu.dot_dimension_numbers<[1], [1], [0], [0], [0, 0, 1, 0], [], []>} : vector<16x4xf32>, vector<32x4xf32>, vector<16x32xf32> -> vector<16x32xf32>
    %c30 = arith.constant 30 : index
    %c0_101 = arith.constant 0 : index
    %300 = vector.load %arg2[%c30, %c0_101] : memref<32x128xf32, #tpu.memory_space<vmem>>, vector<1x32xf32>
    %301 = vector.broadcast %300 : vector<1x32xf32> to vector<16x32xf32>
    %302 = arith.addf %299, %301 : vector<16x32xf32>
    %cst_102 = arith.constant 0.000000e+00 : f32
    %303 = vector.broadcast %cst_102 : f32 to vector<16x32xf32>
    %304 = arith.maximumf %302, %303 : vector<16x32xf32>
    %c488 = arith.constant 488 : index
    %c0_103 = arith.constant 0 : index
    %305 = vector.load %arg1[%c488, %c0_103] : memref<520x4xf32, #tpu.memory_space<vmem>>, vector<32x4xf32>
    %cst_104 = arith.constant dense<0.000000e+00> : vector<16x4xf32>
    %306 = tpu.matmul %304, %305, %cst_104 {dimension_numbers = #tpu.dot_dimension_numbers<[1], [0], [0], [1], [0, 0, 1, 1], [], []>} : vector<16x32xf32>, vector<32x4xf32>, vector<16x4xf32> -> vector<16x4xf32>
    %c31 = arith.constant 31 : index
    %c0_105 = arith.constant 0 : index
    %307 = vector.load %arg2[%c31, %c0_105] : memref<32x128xf32, #tpu.memory_space<vmem>>, vector<1x4xf32>
    %308 = vector.broadcast %307 : vector<1x4xf32> to vector<16x4xf32>
    %309 = arith.addf %306, %308 : vector<16x4xf32>
    %310 = arith.addf %297, %309 : vector<16x4xf32>
    %c28 = arith.constant 28 : index
    %c0_106 = arith.constant 0 : index
    %311 = vector.load %arg2[%c28, %c0_106] : memref<32x128xf32, #tpu.memory_space<vmem>>, vector<1x4xf32>
    %c29 = arith.constant 29 : index
    %c0_107 = arith.constant 0 : index
    %312 = vector.load %arg2[%c29, %c0_107] : memref<32x128xf32, #tpu.memory_space<vmem>>, vector<1x4xf32>
    %cst_108 = arith.constant dense<0.000000e+00> : vector<16xf32>
    %313 = vector.multi_reduction <add>, %310, %cst_108 [1] : vector<16x4xf32> to vector<16xf32>
    %314 = vector.shape_cast %313 : vector<16xf32> to vector<16x1xf32>
    %cst_109 = arith.constant 4.000000e+00 : f32
    %315 = vector.broadcast %cst_109 : f32 to vector<16x1xf32>
    %316 = arith.divf %314, %315 : vector<16x1xf32>
    %317 = vector.broadcast %316 : vector<16x1xf32> to vector<16x4xf32>
    %318 = arith.subf %310, %317 : vector<16x4xf32>
    %319 = arith.mulf %318, %318 : vector<16x4xf32>
    %cst_110 = arith.constant dense<0.000000e+00> : vector<16xf32>
    %320 = vector.multi_reduction <add>, %319, %cst_110 [1] : vector<16x4xf32> to vector<16xf32>
    %321 = vector.shape_cast %320 : vector<16xf32> to vector<16x1xf32>
    %cst_111 = arith.constant 4.000000e+00 : f32
    %322 = vector.broadcast %cst_111 : f32 to vector<16x1xf32>
    %323 = arith.divf %321, %322 : vector<16x1xf32>
    %324 = vector.broadcast %316 : vector<16x1xf32> to vector<16x4xf32>
    %325 = arith.subf %310, %324 : vector<16x4xf32>
    %cst_112 = arith.constant 9.99999974E-6 : f32
    %326 = vector.broadcast %cst_112 : f32 to vector<16x1xf32>
    %327 = arith.addf %323, %326 : vector<16x1xf32>
    %328 = math.rsqrt %327 : vector<16x1xf32>
    %329 = vector.broadcast %328 : vector<16x1xf32> to vector<16x4xf32>
    %330 = arith.mulf %325, %329 : vector<16x4xf32>
    %331 = vector.broadcast %311 : vector<1x4xf32> to vector<16x4xf32>
    %332 = arith.mulf %330, %331 : vector<16x4xf32>
    %333 = vector.broadcast %312 : vector<1x4xf32> to vector<16x4xf32>
    %334 = arith.addf %332, %333 : vector<16x4xf32>
    %c16_113 = arith.constant 16 : index
    %c0_114 = arith.constant 0 : index
    %335 = vector.load %arg3[%c16_113, %c0_114] : memref<24x128xf32, #tpu.memory_space<vmem>>, vector<2x16xf32>
    %cst_115 = arith.constant dense<0.000000e+00> : vector<2x4xf32>
    %336 = tpu.matmul %335, %334, %cst_115 {dimension_numbers = #tpu.dot_dimension_numbers<[1], [0], [0], [1], [0, 0, 1, 1], [], []>} : vector<2x16xf32>, vector<16x4xf32>, vector<2x4xf32> -> vector<2x4xf32>
    %c128 = arith.constant 128 : index
    %c0_116 = arith.constant 0 : index
    %337 = vector.load %arg1[%c128, %c0_116] : memref<520x4xf32, #tpu.memory_space<vmem>>, vector<128x4xf32>
    %cst_117 = arith.constant dense<0.000000e+00> : vector<2x128xf32>
    %338 = tpu.matmul %336, %337, %cst_117 {dimension_numbers = #tpu.dot_dimension_numbers<[1], [1], [0], [0], [0, 0, 1, 0], [], []>} : vector<2x4xf32>, vector<128x4xf32>, vector<2x128xf32> -> vector<2x128xf32>
    %c0_118 = arith.constant 0 : index
    %c0_119 = arith.constant 0 : index
    %339 = vector.load %arg2[%c0_118, %c0_119] : memref<32x128xf32, #tpu.memory_space<vmem>>, vector<1x128xf32>
    %340 = vector.broadcast %339 : vector<1x128xf32> to vector<2x128xf32>
    %341 = arith.addf %338, %340 : vector<2x128xf32>
    %c0_120 = arith.constant 0 : index
    %c0_121 = arith.constant 0 : index
    %342 = vector.load %arg4[%c0_120, %c0_121] : memref<2x128xf32, #tpu.memory_space<vmem>>, vector<2x128xf32>
    tpu.vector_store %arg4[%c0_120, %c0_121], %341 {strides = array<i32>} : memref<2x128xf32, #tpu.memory_space<vmem>>, vector<2x128xf32>,
    return
  }
}

</mosaic_0001>

<llo_original>
// kernel: tpu_custom_call.1
$region0: #{tpu_custom_call.1}
  #allocation0 [shape = 'u32[]', space=smem, size = 0x4, offset = 0x4, fixed_abs, tag = 'smem constant byte address 0x4 - core index']
  #allocation1 [shape = 'u32[72,128]{1,0:T(1,128)}', space=vmem, size = 0x9000, scoped, tag = 'internal scratch']
  %s0 = inlined_call_operand.vmem [shape: s32[16,2], index: 0, kind: input, shape index: {}]
  %s1 = inlined_call_operand.vmem [shape: f32[520,4], index: 1, kind: input, shape index: {}]
  %s2 = inlined_call_operand.vmem [shape: f32[32,128], index: 2, kind: input, shape index: {}]
  %s3 = inlined_call_operand.vmem [shape: f32[24,128], index: 3, kind: input, shape index: {}]
  %s4 = inlined_call_operand.hbm [shape: f32[2,128], index: 4, kind: output, shape index: {}]
  %s5 = sld [smem:[#allocation0]]
  $region26: #{tpu_custom_call.1} parent=0
    _
  %s7 = ssub.s32 1, %s5
  %s8 = scalar_select 0, %s7, %s5
  $region1: #{tpu_custom_call.1} parent=0
    #allocation2 [shape = 'u8[1024]{0}', space=vmem, size = 0x400, scoped, tag = 'output window, operand 0, single buffered']
    #allocation3 [shape = 's32[1]{0}', space=sflag, size = 0x4, scoped, tag = 'scoped memory for tpu_custom_call.1']
    %9 = vsyncpa [#allocation3], 0
    // Predicated region
    $region2: #{tpu_custom_call.1} parent=1 // pred_check
      _
    $region3: #{tpu_custom_call.1} parent=1 // pred_check_branch
      %11 = sbr.rel (0) target = $region5
    $region4: #{tpu_custom_call.1} parent=1 // pred_region
      _
    $region5: #{tpu_custom_call.1} parent=1 // pred_fallthru
      _
    // Predicated region
    $region6: #{tpu_custom_call.1} parent=1 // pred_check
      _
    $region7: #{tpu_custom_call.1} parent=1 // pred_check_branch
      %13 = sbr.rel (0) target = $region9
    $region8: #{tpu_custom_call.1} parent=1 // pred_region
      _
    $region9: #{tpu_custom_call.1} parent=1 // pred_fallthru
      _
    // Predicated region
    $region10: #{tpu_custom_call.1} parent=1 // pred_check
      _
    $region11: #{tpu_custom_call.1} parent=1 // pred_check_branch
      %15 = sbr.rel (0) target = $region13
    $region12: #{tpu_custom_call.1} parent=1 // pred_region
      _
    $region13: #{tpu_custom_call.1} parent=1 // pred_fallthru
      _
    // Predicated region
    $region14: #{tpu_custom_call.1} parent=1 // pred_check
      _
    $region15: #{tpu_custom_call.1} parent=1 // pred_check_branch
      %17 = sbr.rel (0) target = $region17
    $region16: #{tpu_custom_call.1} parent=1 // pred_region
      _
    $region17: #{tpu_custom_call.1} parent=1 // pred_fallthru
      _
    %v18 = vld [vmem:[%s0] sm:$0xff]
    %v19 = vld [vmem:[%s0 + $0x8] sm:$0xff]
    %v20 = vlaneseq
    %v21 = vand.u32 %v20, 127
    %22 = vset.pattern.permute.xlu0 0
    %23 = vperm.xlu0 %22, %v18
    %v24 = vpop.permute.xlu0 %23
    %25 = vset.pattern.permute.xlu0 0
    %26 = vperm.xlu0 %25, %v19
    %v27 = vpop.permute.xlu0 %26
    %vm28 = vcmp.eq.s32.totalorder %v21, %v24
    %vm29 = vcmp.eq.s32.totalorder %v21, %v27
    %30 = vset.pattern.permute.xlu0 1
    %31 = vperm.xlu0 %30, %v18
    %v32 = vpop.permute.xlu0 %31
    %33 = vset.pattern.permute.xlu0 1
    %34 = vperm.xlu0 %33, %v19
    %v35 = vpop.permute.xlu0 %34
    %vm36 = vcmp.eq.s32.totalorder %v21, %v32
    %vm37 = vcmp.eq.s32.totalorder %v21, %v35
    %vm38 = vmor %vm28, %vm36
    %vm39 = vmor %vm29, %vm37
    %v40 = vsel %vm38, 1, 0
    %v41 = vsel %vm39, 1, 0
    %v42 = vcvt.s32.f32 %v40
    %v43 = vcvt.s32.f32 %v41
    %v44 = vld [vmem:[%s1] sm:$0xff]
    %v45 = vld [vmem:[%s1 + $0x8] sm:$0xff]
    %v46 = vld [vmem:[%s1 + $0x10] sm:$0xff]
    %v47 = vld [vmem:[%s1 + $0x18] sm:$0xff]
    %v48 = vld [vmem:[%s1 + $0x20] sm:$0xff]
    %v49 = vld [vmem:[%s1 + $0x28] sm:$0xff]
    %v50 = vld [vmem:[%s1 + $0x30] sm:$0xff]
    %v51 = vld [vmem:[%s1 + $0x38] sm:$0xff]
    %v52 = vld [vmem:[%s1 + $0x40] sm:$0xff]
    %v53 = vld [vmem:[%s1 + $0x48] sm:$0xff]
    %v54 = vld [vmem:[%s1 + $0x50] sm:$0xff]
    %v55 = vld [vmem:[%s1 + $0x58] sm:$0xff]
    %v56 = vld [vmem:[%s1 + $0x60] sm:$0xff]
    %v57 = vld [vmem:[%s1 + $0x68] sm:$0xff]
    %v58 = vld [vmem:[%s1 + $0x70] sm:$0xff]
    %v59 = vld [vmem:[%s1 + $0x78] sm:$0xff]
    %60 = vmatpush.msra.mxu0 %v59
    %61 = vmatpush.msra.mxu0 %v58
    %62 = vmatpush.msra.mxu0 %v57
    %63 = vmatpush.msra.mxu0 %v56
    %64 = vmatpush.msra.mxu0 %v55
    %65 = vmatpush.msra.mxu0 %v54
    %66 = vmatpush.msra.mxu0 %v53
    %67 = vmatpush.msra.mxu0 %v52
    %68 = vmatpush.msra.mxu0 %v51
    %69 = vmatpush.msra.mxu0 %v50
    %70 = vmatpush.msra.mxu0 %v49
    %71 = vmatpush.msra.mxu0 %v48
    %72 = vmatpush.msra.mxu0 %v47
    %73 = vmatpush.msra.mxu0 %v46
    %74 = vmatpush.msra.mxu0 %v45
    %75 = vmatpush.msra.mxu0 %v44
    %76 = vmatmul.f32.gmra.mxu0 %v42
    %v77 = vpop.f32.mrf.mxu0
    %v78 = vadd.f32 0.0, %v77
    %79 = vmatmul.f32.gmra.mxu0 %v43
    %v80 = vpop.f32.mrf.mxu0
    %v81 = vadd.f32 0.0, %v80
    %82 = vdwg.mxu0
    %v83 = vld [vmem:[%s3] sm:$0xff]
    %v84 = vld [vmem:[%s3 + $0x8] sm:$0xff]
    %v85 = vld [vmem:[%s1 + $0x100] sm:$0xff]
    %v86 = vld [vmem:[%s1 + $0x108] sm:$0xff]
    %v87 = vld [vmem:[%s2 + $0x8] sm:$0x1]
    %v88 = vperm.slane %v87, 0
    %vm89 = vcmask 31744
    %v91 = vsel %vm89, %v78, 0
    %v94 = vsel %vm89, %v81, 0
    %v97 = vsel %vm89, %v85, 0
    %v100 = vsel %vm89, %v86, 0
    %102 = vmatpush.xpose.msra.mxu0 0.0
    %103 = vmatpush.xpose.msra.mxu0 0.0
    %104 = vmatpush.xpose.msra.mxu0 0.0
    %105 = vmatpush.xpose.msra.mxu0 0.0
    %106 = vmatpush.xpose.msra.mxu0 0.0
    %107 = vmatpush.xpose.msra.mxu0 0.0
    %108 = vmatpush.xpose.msra.mxu0 0.0
    %109 = vmatpush.xpose.msra.mxu0 0.0
    %110 = vmatpush.xpose.msra.mxu0 0.0
    %111 = vmatpush.xpose.msra.mxu0 0.0
    %112 = vmatpush.xpose.msra.mxu0 0.0
    %113 = vmatpush.xpose.msra.mxu0 0.0
    %114 = vmatpush.xpose.msra.mxu0 0.0
    %115 = vmatpush.xpose.msra.mxu0 0.0
    %116 = vmatpush.xpose.msra.mxu0 %v100
    %117 = vmatpush.xpose.msra.mxu0 %v97
    %118 = vmatmul.f32.gmra.mxu0 %v91
    %v119 = vpop.f32.mrf.mxu0
    %v120 = vadd.f32 %v88, %v119
    %121 = vmatmul.f32.gmra.mxu0 %v94
    %v122 = vpop.f32.mrf.mxu0
    %v123 = vadd.f32 %v88, %v122
    %124 = vdwg.mxu0
    %127 = vrot.lane.b32.xlu0 %v120, 124
    %v128 = vpop.permute.xlu0 %127
    %129 = vrot.lane.b32.xlu0 %v123, 124
    %v130 = vpop.permute.xlu0 %129
    %vm131 = vcmask 15360
    %v132 = vsel %vm131, %v120, 0
    %v134 = vsel %vm131, %v123, 0
    %v136 = vsel %vm131, %v128, 0
    %v138 = vsel %vm131, %v130, 0
    %140 = vmatpush.xpose.msra.mxu0 0.0
    %141 = vmatpush.xpose.msra.mxu0 0.0
    %142 = vmatpush.xpose.msra.mxu0 0.0
    %143 = vmatpush.xpose.msra.mxu0 0.0
    %144 = vmatpush.xpose.msra.mxu0 0.0
    %145 = vmatpush.xpose.msra.mxu0 0.0
    %146 = vmatpush.xpose.msra.mxu0 0.0
    %147 = vmatpush.xpose.msra.mxu0 0.0
    %148 = vmatpush.xpose.msra.mxu0 0.0
    %149 = vmatpush.xpose.msra.mxu0 0.0
    %150 = vmatpush.xpose.msra.mxu0 0.0
    %151 = vmatpush.xpose.msra.mxu0 0.0
    %152 = vmatpush.xpose.msra.mxu0 0.0
    %153 = vmatpush.xpose.msra.mxu0 0.0
    %154 = vmatpush.xpose.msra.mxu0 %v138
    %155 = vmatpush.xpose.msra.mxu0 %v136
    %156 = vmatmul.f32.gmra.mxu0 %v132
    %v157 = vpop.f32.mrf.mxu0
    %v158 = vadd.f32 %v83, %v157
    %159 = vmatmul.f32.gmra.mxu0 %v134
    %v160 = vpop.f32.mrf.mxu0
    %v161 = vadd.f32 %v84, %v160
    %162 = vdwg.mxu0
    %vm163 = vcmask 130048
    %v164 = vsel %vm163, %v158, -inf
    %165 = vmax.xlane.f32.xlu0 %v164
    %v166 = vpop.xlane.xlu0 %165
    %v167 = vsel %vm163, %v161, -inf
    %168 = vmax.xlane.f32.xlu0 %v167
    %v169 = vpop.xlane.xlu0 %168
    %v170 = vsub.f32 %v158, %v166
    %v171 = vsub.f32 %v161, %v169
    %v172 = vmul.f32 %v170, 1.442695
    %v173 = vpow.pop %v172
    %v174 = vmul.f32 %v171, 1.442695
    %v175 = vpow.pop %v174
    %v176 = vsel %vm163, %v173, 0.0
    %177 = vadd.xlane.f32.xlu0 %v176
    %v178 = vpop.xlane.xlu0 %177
    %v179 = vsel %vm163, %v175, 0.0
    %180 = vadd.xlane.f32.xlu0 %v179
    %v181 = vpop.xlane.xlu0 %180
    %v182 = vrcp.pop %v178
    %v183 = vrcp.pop %v181
    %v184 = vmul.f32 %v173, %v182
    %v185 = vmul.f32 %v175, %v183
    %186 = vrot.lane.b32.xlu0 %v120, 126
    %v187 = vpop.permute.xlu0 %186
    %188 = vrot.lane.b32.xlu0 %v123, 126
    %v189 = vpop.permute.xlu0 %188
    %190 = vrot.lane.b32.xlu0 %v120, 122
    %v191 = vpop.permute.xlu0 %190
    %192 = vrot.lane.b32.xlu0 %v123, 122
    %v193 = vpop.permute.xlu0 %192
    %v194 = vsel %vm131, %v187, 0
    %v196 = vsel %vm131, %v189, 0
    %v198 = vsel %vm131, %v191, 0
    %v200 = vsel %vm131, %v193, 0
    %202 = vmatpush.xpose.msra.mxu0 0.0
    %203 = vmatpush.xpose.msra.mxu0 0.0
    %204 = vmatpush.xpose.msra.mxu0 0.0
    %205 = vmatpush.xpose.msra.mxu0 0.0
    %206 = vmatpush.xpose.msra.mxu0 0.0
    %207 = vmatpush.xpose.msra.mxu0 0.0
    %208 = vmatpush.xpose.msra.mxu0 0.0
    %209 = vmatpush.xpose.msra.mxu0 0.0
    %210 = vmatpush.xpose.msra.mxu0 0.0
    %211 = vmatpush.xpose.msra.mxu0 0.0
    %212 = vmatpush.xpose.msra.mxu0 0.0
    %213 = vmatpush.xpose.msra.mxu0 0.0
    %214 = vmatpush.xpose.msra.mxu0 0.0
    %215 = vmatpush.xpose.msra.mxu0 0.0
    %216 = vmatpush.xpose.msra.mxu0 %v200
    %217 = vmatpush.xpose.msra.mxu0 %v198
    %218 = vmatmul.f32.gmra.mxu0 %v194
    %v219 = vpop.f32.mrf.mxu0
    %v220 = vadd.f32 %v83, %v219
    %221 = vmatmul.f32.gmra.mxu0 %v196
    %v222 = vpop.f32.mrf.mxu0
    %v223 = vadd.f32 %v84, %v222
    %224 = vdwg.mxu0
    %v225 = vsel %vm163, %v220, -inf
    %226 = vmax.xlane.f32.xlu0 %v225
    %v227 = vpop.xlane.xlu0 %226
    %v228 = vsel %vm163, %v223, -inf
    %229 = vmax.xlane.f32.xlu0 %v228
    %v230 = vpop.xlane.xlu0 %229
    %v231 = vsub.f32 %v220, %v227
    %v232 = vsub.f32 %v223, %v230
    %v233 = vmul.f32 %v231, 1.442695
    %v234 = vpow.pop %v233
    %v235 = vmul.f32 %v232, 1.442695
    %v236 = vpow.pop %v235
    %v237 = vsel %vm163, %v234, 0.0
    %238 = vadd.xlane.f32.xlu0 %v237
    %v239 = vpop.xlane.xlu0 %238
    %v240 = vsel %vm163, %v236, 0.0
    %241 = vadd.xlane.f32.xlu0 %v240
    %v242 = vpop.xlane.xlu0 %241
    %v243 = vrcp.pop %v239
    %v244 = vrcp.pop %v242
    %v245 = vmul.f32 %v234, %v243
    %v246 = vmul.f32 %v236, %v244
    %247 = vrot.lane.b32.xlu0 %v120, 116
    %v248 = vpop.permute.xlu0 %247
    %249 = vrot.lane.b32.xlu0 %v123, 116
    %v250 = vpop.permute.xlu0 %249
    %v254 = vsel %vm163, %v245, 0
    %v257 = vsel %vm163, %v246, 0
    %259 = vmatpush.msra.mxu0 0.0
    %260 = vmatpush.msra.mxu0 0.0
    %261 = vmatpush.msra.mxu0 0.0
    %262 = vmatpush.msra.mxu0 0.0
    %263 = vmatpush.msra.mxu0 0.0
    %264 = vmatpush.msra.mxu0 0.0
    %265 = vmatpush.msra.mxu0 0.0
    %266 = vmatpush.msra.mxu0 0.0
    %267 = vmatpush.msra.mxu0 0.0
    %268 = vmatpush.msra.mxu0 0.0
    %269 = vmatpush.msra.mxu0 0.0
    %270 = vmatpush.msra.mxu0 0.0
    %271 = vmatpush.msra.mxu0 0.0
    %272 = vmatpush.msra.mxu0 0.0
    %273 = vmatpush.msra.mxu0 %v250
    %274 = vmatpush.msra.mxu0 %v248
    %275 = vmatmul.f32.gmra.mxu0 %v254
    %v276 = vpop.f32.mrf.mxu0
    %v277 = vadd.f32 0.0, %v276
    %278 = vmatmul.f32.gmra.mxu0 %v257
    %v279 = vpop.f32.mrf.mxu0
    %v280 = vadd.f32 0.0, %v279
    %281 = vdwg.mxu0
    %282 = vrot.lane.b32.xlu0 %v120, 120
    %v283 = vpop.permute.xlu0 %282
    %284 = vrot.lane.b32.xlu0 %v123, 120
    %v285 = vpop.permute.xlu0 %284
    %v289 = vsel %vm163, %v184, 0
    %v292 = vsel %vm163, %v185, 0
    %294 = vmatpush.msra.mxu0 0.0
    %295 = vmatpush.msra.mxu0 0.0
    %296 = vmatpush.msra.mxu0 0.0
    %297 = vmatpush.msra.mxu0 0.0
    %298 = vmatpush.msra.mxu0 0.0
    %299 = vmatpush.msra.mxu0 0.0
    %300 = vmatpush.msra.mxu0 0.0
    %301 = vmatpush.msra.mxu0 0.0
    %302 = vmatpush.msra.mxu0 0.0
    %303 = vmatpush.msra.mxu0 0.0
    %304 = vmatpush.msra.mxu0 0.0
    %305 = vmatpush.msra.mxu0 0.0
    %306 = vmatpush.msra.mxu0 0.0
    %307 = vmatpush.msra.mxu0 0.0
    %308 = vmatpush.msra.mxu0 %v285
    %309 = vmatpush.msra.mxu0 %v283
    %310 = vmatmul.f32.gmra.mxu0 %v289
    %v311 = vpop.f32.mrf.mxu0
    %v312 = vadd.f32 %v277, %v311
    %313 = vmatmul.f32.gmra.mxu0 %v292
    %v314 = vpop.f32.mrf.mxu0
    %v315 = vadd.f32 %v280, %v314
    %316 = vdwg.mxu0
    %v317 = vld [vmem:[%s1 + $0x110] sm:$0xf]
    %v318 = vld [vmem:[%s2 + $0x9] sm:$0x1]
    %v319 = vperm.slane %v318, 0
    %v321 = vsel %vm89, %v312, 0
    %v324 = vsel %vm89, %v315, 0
    %vm326 = vcmask 1043456
    %v328 = vsel %vm326, %v317, 0
    %330 = vmatpush.msra.mxu0 0.0
    %331 = vmatpush.msra.mxu0 0.0
    %332 = vmatpush.msra.mxu0 0.0
    %333 = vmatpush.msra.mxu0 0.0
    %334 = vmatpush.msra.mxu0 0.0
    %335 = vmatpush.msra.mxu0 0.0
    %336 = vmatpush.msra.mxu0 0.0
    %337 = vmatpush.msra.mxu0 0.0
    %338 = vmatpush.msra.mxu0 0.0
    %339 = vmatpush.msra.mxu0 0.0
    %340 = vmatpush.msra.mxu0 0.0
    %341 = vmatpush.msra.mxu0 0.0
    %342 = vmatpush.msra.mxu0 0.0
    %343 = vmatpush.msra.mxu0 0.0
    %344 = vmatpush.msra.mxu0 0.0
    %345 = vmatpush.msra.mxu0 %v328
    %346 = vmatmul.f32.gmra.mxu0 %v321
    %v347 = vpop.f32.mrf.mxu0
    %v348 = vadd.f32 %v319, %v347
    %349 = vmatmul.f32.gmra.mxu0 %v324
    %v350 = vpop.f32.mrf.mxu0
    %v351 = vadd.f32 %v319, %v350
    %352 = vdwg.mxu0
    %v353 = vadd.f32 %v78, %v348
    %v354 = vadd.f32 %v81, %v351
    %v355 = vld [vmem:[%s2 + $0xa] sm:$0x1]
    %v356 = vld [vmem:[%s2 + $0xb] sm:$0x1]
    %v357 = vsel %vm89, %v353, 0.0
    %358 = vadd.xlane.f32.xlu0 %v357
    %v359 = vpop.xlane.xlu0 %358
    %v360 = vsel %vm89, %v354, 0.0
    %361 = vadd.xlane.f32.xlu0 %v360
    %v362 = vpop.xlane.xlu0 %361
    %v363 = vrcp.pop 4.0
    %v364 = vmul.f32 4.0, %v363
    %v365 = vsub.f32 1.0, %v364
    %v366 = vmul.f32 %v363, %v365
    %v367 = vadd.f32 %v363, %v366
    %vm368 = vweird.f32 %v363
    %v369 = vsel %vm368, %v363, %v367
    %v370 = vmul.f32 %v359, %v369
    %v371 = vmul.f32 %v362, %v369
    %v372 = vsub.f32 %v353, %v370
    %v373 = vsub.f32 %v354, %v371
    %v374 = vmul.f32 %v372, %v372
    %v375 = vmul.f32 %v373, %v373
    %v376 = vsel %vm89, %v374, 0.0
    %377 = vadd.xlane.f32.xlu0 %v376
    %v378 = vpop.xlane.xlu0 %377
    %v379 = vsel %vm89, %v375, 0.0
    %380 = vadd.xlane.f32.xlu0 %v379
    %v381 = vpop.xlane.xlu0 %380
    %v382 = vmul.f32 %v378, %v369
    %v383 = vmul.f32 %v381, %v369
    %v384 = vadd.f32 %v382, 1e-05
    %v385 = vadd.f32 %v383, 1e-05
    %v386 = vrsqrt.pop %v384
    %v387 = vmul.f32 %v386, %v384
    %v388 = vmul.f32 %v387, %v386
    %v389 = vmul.f32 0.5, %v388
    %v390 = vsub.f32 1.5, %v389
    %v391 = vmul.f32 %v386, %v390
    %vm392 = vweird.f32 %v384
    %vm393 = vweird.f32 %v386
    %vm394 = vmor %vm392, %vm393
    %v395 = vsel %vm394, %v386, %v391
    %v396 = vrsqrt.pop %v385
    %v397 = vmul.f32 %v396, %v385
    %v398 = vmul.f32 %v397, %v396
    %v399 = vmul.f32 0.5, %v398
    %v400 = vsub.f32 1.5, %v399
    %v401 = vmul.f32 %v396, %v400
    %vm402 = vweird.f32 %v385
    %vm403 = vweird.f32 %v396
    %vm404 = vmor %vm402, %vm403
    %v405 = vsel %vm404, %v396, %v401
    %v406 = vmul.f32 %v372, %v395
    %v407 = vmul.f32 %v373, %v405
    %v408 = vperm.slane %v355, 0
    %v409 = vmul.f32 %v406, %v408
    %v410 = vmul.f32 %v407, %v408
    %v411 = vperm.slane %v356, 0
    %v412 = vadd.f32 %v409, %v411
    %v413 = vadd.f32 %v410, %v411
    %v414 = vld [vmem:[%s1 + $0x118] sm:$0xff]
    %v415 = vld [vmem:[%s1 + $0x120] sm:$0xff]
    %v416 = vld [vmem:[%s1 + $0x128] sm:$0xff]
    %v417 = vld [vmem:[%s1 + $0x130] sm:$0xff]
    %v418 = vld [vmem:[%s2 + $0xe] sm:$0x1]
    %v419 = vperm.slane %v418, 0
    %v421 = vsel %vm89, %v412, 0
    %v424 = vsel %vm89, %v413, 0
    %v427 = vsel %vm89, %v414, 0
    %v430 = vsel %vm89, %v415, 0
    %v433 = vsel %vm89, %v416, 0
    %v436 = vsel %vm89, %v417, 0
    %438 = vmatpush.xpose.msra.mxu0 0.0
    %439 = vmatpush.xpose.msra.mxu0 0.0
    %440 = vmatpush.xpose.msra.mxu0 0.0
    %441 = vmatpush.xpose.msra.mxu0 0.0
    %442 = vmatpush.xpose.msra.mxu0 0.0
    %443 = vmatpush.xpose.msra.mxu0 0.0
    %444 = vmatpush.xpose.msra.mxu0 0.0
    %445 = vmatpush.xpose.msra.mxu0 0.0
    %446 = vmatpush.xpose.msra.mxu0 0.0
    %447 = vmatpush.xpose.msra.mxu0 0.0
    %448 = vmatpush.xpose.msra.mxu0 0.0
    %449 = vmatpush.xpose.msra.mxu0 0.0
    %450 = vmatpush.xpose.msra.mxu0 %v436
    %451 = vmatpush.xpose.msra.mxu0 %v433
    %452 = vmatpush.xpose.msra.mxu0 %v430
    %453 = vmatpush.xpose.msra.mxu0 %v427
    %454 = vmatmul.f32.gmra.mxu0 %v421
    %v455 = vpop.f32.mrf.mxu0
    %v456 = vadd.f32 %v419, %v455
    %457 = vmatmul.f32.gmra.mxu0 %v424
    %v458 = vpop.f32.mrf.mxu0
    %v459 = vadd.f32 %v419, %v458
    %460 = vdwg.mxu0
    %v461 = vmax.f32 %v456, 0.0
    %v462 = vmax.f32 %v459, 0.0
    %v463 = vld [vmem:[%s1 + $0x138] sm:$0xff]
    %v464 = vld [vmem:[%s1 + $0x140] sm:$0xff]
    %v465 = vld [vmem:[%s1 + $0x148] sm:$0xff]
    %v466 = vld [vmem:[%s1 + $0x150] sm:$0xff]
    %v467 = vld [vmem:[%s2 + $0xf] sm:$0x1]
    %v468 = vperm.slane %v467, 0
    %vm469 = vcmask 261120
    %v471 = vsel %vm469, %v461, 0
    %v474 = vsel %vm469, %v462, 0
    %476 = vmatpush.msra.mxu0 0.0
    %477 = vmatpush.msra.mxu0 0.0
    %478 = vmatpush.msra.mxu0 0.0
    %479 = vmatpush.msra.mxu0 0.0
    %480 = vmatpush.msra.mxu0 0.0
    %481 = vmatpush.msra.mxu0 0.0
    %482 = vmatpush.msra.mxu0 0.0
    %483 = vmatpush.msra.mxu0 0.0
    %484 = vmatpush.msra.mxu0 0.0
    %485 = vmatpush.msra.mxu0 0.0
    %486 = vmatpush.msra.mxu0 0.0
    %487 = vmatpush.msra.mxu0 0.0
    %488 = vmatpush.msra.mxu0 %v466
    %489 = vmatpush.msra.mxu0 %v465
    %490 = vmatpush.msra.mxu0 %v464
    %491 = vmatpush.msra.mxu0 %v463
    %492 = vmatmul.f32.gmra.mxu0 %v471
    %v493 = vpop.f32.mrf.mxu0
    %v494 = vadd.f32 %v468, %v493
    %495 = vmatmul.f32.gmra.mxu0 %v474
    %v496 = vpop.f32.mrf.mxu0
    %v497 = vadd.f32 %v468, %v496
    %498 = vdwg.mxu0
    %v499 = vadd.f32 %v412, %v494
    %v500 = vadd.f32 %v413, %v497
    %v501 = vld [vmem:[%s2 + $0xc] sm:$0x1]
    %v502 = vld [vmem:[%s2 + $0xd] sm:$0x1]
    %v503 = vsel %vm89, %v499, 0.0
    %504 = vadd.xlane.f32.xlu0 %v503
    %v505 = vpop.xlane.xlu0 %504
    %v506 = vsel %vm89, %v500, 0.0
    %507 = vadd.xlane.f32.xlu0 %v506
    %v508 = vpop.xlane.xlu0 %507
    %v509 = vmul.f32 %v505, %v369
    %v510 = vmul.f32 %v508, %v369
    %v511 = vsub.f32 %v499, %v509
    %v512 = vsub.f32 %v500, %v510
    %v513 = vmul.f32 %v511, %v511
    %v514 = vmul.f32 %v512, %v512
    %v515 = vsel %vm89, %v513, 0.0
    %516 = vadd.xlane.f32.xlu0 %v515
    %v517 = vpop.xlane.xlu0 %516
    %v518 = vsel %vm89, %v514, 0.0
    %519 = vadd.xlane.f32.xlu0 %v518
    %v520 = vpop.xlane.xlu0 %519
    %v521 = vmul.f32 %v517, %v369
    %v522 = vmul.f32 %v520, %v369
    %v523 = vadd.f32 %v521, 1e-05
    %v524 = vadd.f32 %v522, 1e-05
    %v525 = vrsqrt.pop %v523
    %v526 = vmul.f32 %v525, %v523
    %v527 = vmul.f32 %v526, %v525
    %v528 = vmul.f32 0.5, %v527
    %v529 = vsub.f32 1.5, %v528
    %v530 = vmul.f32 %v525, %v529
    %vm531 = vweird.f32 %v523
    %vm532 = vweird.f32 %v525
    %vm533 = vmor %vm531, %vm532
    %v534 = vsel %vm533, %v525, %v530
    %v535 = vrsqrt.pop %v524
    %v536 = vmul.f32 %v535, %v524
    %v537 = vmul.f32 %v536, %v535
    %v538 = vmul.f32 0.5, %v537
    %v539 = vsub.f32 1.5, %v538
    %v540 = vmul.f32 %v535, %v539
    %vm541 = vweird.f32 %v524
    %vm542 = vweird.f32 %v535
    %vm543 = vmor %vm541, %vm542
    %v544 = vsel %vm543, %v535, %v540
    %v545 = vmul.f32 %v511, %v534
    %v546 = vmul.f32 %v512, %v544
    %v547 = vperm.slane %v501, 0
    %v548 = vmul.f32 %v545, %v547
    %v549 = vmul.f32 %v546, %v547
    %v550 = vperm.slane %v502, 0
    %v551 = vadd.f32 %v548, %v550
    %v552 = vadd.f32 %v549, %v550
    %v553 = vld [vmem:[%s1 + $0x158] sm:$0xff]
    %v554 = vld [vmem:[%s1 + $0x160] sm:$0xff]
    %v555 = vld [vmem:[%s2 + $0x10] sm:$0x1]
    %v556 = vperm.slane %v555, 0
    %v558 = vsel %vm89, %v551, 0
    %v561 = vsel %vm89, %v552, 0
    %v564 = vsel %vm89, %v553, 0
    %v567 = vsel %vm89, %v554, 0
    %569 = vmatpush.xpose.msra.mxu0 0.0
    %570 = vmatpush.xpose.msra.mxu0 0.0
    %571 = vmatpush.xpose.msra.mxu0 0.0
    %572 = vmatpush.xpose.msra.mxu0 0.0
    %573 = vmatpush.xpose.msra.mxu0 0.0
    %574 = vmatpush.xpose.msra.mxu0 0.0
    %575 = vmatpush.xpose.msra.mxu0 0.0
    %576 = vmatpush.xpose.msra.mxu0 0.0
    %577 = vmatpush.xpose.msra.mxu0 0.0
    %578 = vmatpush.xpose.msra.mxu0 0.0
    %579 = vmatpush.xpose.msra.mxu0 0.0
    %580 = vmatpush.xpose.msra.mxu0 0.0
    %581 = vmatpush.xpose.msra.mxu0 0.0
    %582 = vmatpush.xpose.msra.mxu0 0.0
    %583 = vmatpush.xpose.msra.mxu0 %v567
    %584 = vmatpush.xpose.msra.mxu0 %v564
    %585 = vmatmul.f32.gmra.mxu0 %v558
    %v586 = vpop.f32.mrf.mxu0
    %v587 = vadd.f32 %v556, %v586
    %588 = vmatmul.f32.gmra.mxu0 %v561
    %v589 = vpop.f32.mrf.mxu0
    %v590 = vadd.f32 %v556, %v589
    %591 = vdwg.mxu0
    %594 = vrot.lane.b32.xlu0 %v587, 124
    %v595 = vpop.permute.xlu0 %594
    %596 = vrot.lane.b32.xlu0 %v590, 124
    %v597 = vpop.permute.xlu0 %596
    %v598 = vsel %vm131, %v587, 0
    %v600 = vsel %vm131, %v590, 0
    %v602 = vsel %vm131, %v595, 0
    %v604 = vsel %vm131, %v597, 0
    %606 = vmatpush.xpose.msra.mxu0 0.0
    %607 = vmatpush.xpose.msra.mxu0 0.0
    %608 = vmatpush.xpose.msra.mxu0 0.0
    %609 = vmatpush.xpose.msra.mxu0 0.0
    %610 = vmatpush.xpose.msra.mxu0 0.0
    %611 = vmatpush.xpose.msra.mxu0 0.0
    %612 = vmatpush.xpose.msra.mxu0 0.0
    %613 = vmatpush.xpose.msra.mxu0 0.0
    %614 = vmatpush.xpose.msra.mxu0 0.0
    %615 = vmatpush.xpose.msra.mxu0 0.0
    %616 = vmatpush.xpose.msra.mxu0 0.0
    %617 = vmatpush.xpose.msra.mxu0 0.0
    %618 = vmatpush.xpose.msra.mxu0 0.0
    %619 = vmatpush.xpose.msra.mxu0 0.0
    %620 = vmatpush.xpose.msra.mxu0 %v604
    %621 = vmatpush.xpose.msra.mxu0 %v602
    %622 = vmatmul.f32.gmra.mxu0 %v598
    %v623 = vpop.f32.mrf.mxu0
    %v624 = vadd.f32 %v83, %v623
    %625 = vmatmul.f32.gmra.mxu0 %v600
    %v626 = vpop.f32.mrf.mxu0
    %v627 = vadd.f32 %v84, %v626
    %628 = vdwg.mxu0
    %v629 = vsel %vm163, %v624, -inf
    %630 = vmax.xlane.f32.xlu0 %v629
    %v631 = vpop.xlane.xlu0 %630
    %v632 = vsel %vm163, %v627, -inf
    %633 = vmax.xlane.f32.xlu0 %v632
    %v634 = vpop.xlane.xlu0 %633
    %v635 = vsub.f32 %v624, %v631
    %v636 = vsub.f32 %v627, %v634
    %v637 = vmul.f32 %v635, 1.442695
    %v638 = vpow.pop %v637
    %v639 = vmul.f32 %v636, 1.442695
    %v640 = vpow.pop %v639
    %v641 = vsel %vm163, %v638, 0.0
    %642 = vadd.xlane.f32.xlu0 %v641
    %v643 = vpop.xlane.xlu0 %642
    %v644 = vsel %vm163, %v640, 0.0
    %645 = vadd.xlane.f32.xlu0 %v644
    %v646 = vpop.xlane.xlu0 %645
    %v647 = vrcp.pop %v643
    %v648 = vrcp.pop %v646
    %v649 = vmul.f32 %v638, %v647
    %v650 = vmul.f32 %v640, %v648
    %651 = vrot.lane.b32.xlu0 %v587, 126
    %v652 = vpop.permute.xlu0 %651
    %653 = vrot.lane.b32.xlu0 %v590, 126
    %v654 = vpop.permute.xlu0 %653
    %655 = vrot.lane.b32.xlu0 %v587, 122
    %v656 = vpop.permute.xlu0 %655
    %657 = vrot.lane.b32.xlu0 %v590, 122
    %v658 = vpop.permute.xlu0 %657
    %v659 = vsel %vm131, %v652, 0
    %v661 = vsel %vm131, %v654, 0
    %v663 = vsel %vm131, %v656, 0
    %v665 = vsel %vm131, %v658, 0
    %667 = vmatpush.xpose.msra.mxu0 0.0
    %668 = vmatpush.xpose.msra.mxu0 0.0
    %669 = vmatpush.xpose.msra.mxu0 0.0
    %670 = vmatpush.xpose.msra.mxu0 0.0
    %671 = vmatpush.xpose.msra.mxu0 0.0
    %672 = vmatpush.xpose.msra.mxu0 0.0
    %673 = vmatpush.xpose.msra.mxu0 0.0
    %674 = vmatpush.xpose.msra.mxu0 0.0
    %675 = vmatpush.xpose.msra.mxu0 0.0
    %676 = vmatpush.xpose.msra.mxu0 0.0
    %677 = vmatpush.xpose.msra.mxu0 0.0
    %678 = vmatpush.xpose.msra.mxu0 0.0
    %679 = vmatpush.xpose.msra.mxu0 0.0
    %680 = vmatpush.xpose.msra.mxu0 0.0
    %681 = vmatpush.xpose.msra.mxu0 %v665
    %682 = vmatpush.xpose.msra.mxu0 %v663
    %683 = vmatmul.f32.gmra.mxu0 %v659
    %v684 = vpop.f32.mrf.mxu0
    %v685 = vadd.f32 %v83, %v684
    %686 = vmatmul.f32.gmra.mxu0 %v661
    %v687 = vpop.f32.mrf.mxu0
    %v688 = vadd.f32 %v84, %v687
    %689 = vdwg.mxu0
    %v690 = vsel %vm163, %v685, -inf
    %691 = vmax.xlane.f32.xlu0 %v690
    %v692 = vpop.xlane.xlu0 %691
    %v693 = vsel %vm163, %v688, -inf
    %694 = vmax.xlane.f32.xlu0 %v693
    %v695 = vpop.xlane.xlu0 %694
    %v696 = vsub.f32 %v685, %v692
    %v697 = vsub.f32 %v688, %v695
    %v698 = vmul.f32 %v696, 1.442695
    %v699 = vpow.pop %v698
    %v700 = vmul.f32 %v697, 1.442695
    %v701 = vpow.pop %v700
    %v702 = vsel %vm163, %v699, 0.0
    %703 = vadd.xlane.f32.xlu0 %v702
    %v704 = vpop.xlane.xlu0 %703
    %v705 = vsel %vm163, %v701, 0.0
    %706 = vadd.xlane.f32.xlu0 %v705
    %v707 = vpop.xlane.xlu0 %706
    %v708 = vrcp.pop %v704
    %v709 = vrcp.pop %v707
    %v710 = vmul.f32 %v699, %v708
    %v711 = vmul.f32 %v701, %v709
    %712 = vrot.lane.b32.xlu0 %v587, 116
    %v713 = vpop.permute.xlu0 %712
    %714 = vrot.lane.b32.xlu0 %v590, 116
    %v715 = vpop.permute.xlu0 %714
    %v719 = vsel %vm163, %v710, 0
    %v722 = vsel %vm163, %v711, 0
    %724 = vmatpush.msra.mxu0 0.0
    %725 = vmatpush.msra.mxu0 0.0
    %726 = vmatpush.msra.mxu0 0.0
    %727 = vmatpush.msra.mxu0 0.0
    %728 = vmatpush.msra.mxu0 0.0
    %729 = vmatpush.msra.mxu0 0.0
    %730 = vmatpush.msra.mxu0 0.0
    %731 = vmatpush.msra.mxu0 0.0
    %732 = vmatpush.msra.mxu0 0.0
    %733 = vmatpush.msra.mxu0 0.0
    %734 = vmatpush.msra.mxu0 0.0
    %735 = vmatpush.msra.mxu0 0.0
    %736 = vmatpush.msra.mxu0 0.0
    %737 = vmatpush.msra.mxu0 0.0
    %738 = vmatpush.msra.mxu0 %v715
    %739 = vmatpush.msra.mxu0 %v713
    %740 = vmatmul.f32.gmra.mxu0 %v719
    %v741 = vpop.f32.mrf.mxu0
    %v742 = vadd.f32 0.0, %v741
    %743 = vmatmul.f32.gmra.mxu0 %v722
    %v744 = vpop.f32.mrf.mxu0
    %v745 = vadd.f32 0.0, %v744
    %746 = vdwg.mxu0
    %747 = vrot.lane.b32.xlu0 %v587, 120
    %v748 = vpop.permute.xlu0 %747
    %749 = vrot.lane.b32.xlu0 %v590, 120
    %v750 = vpop.permute.xlu0 %749
    %v754 = vsel %vm163, %v649, 0
    %v757 = vsel %vm163, %v650, 0
    %759 = vmatpush.msra.mxu0 0.0
    %760 = vmatpush.msra.mxu0 0.0
    %761 = vmatpush.msra.mxu0 0.0
    %762 = vmatpush.msra.mxu0 0.0
    %763 = vmatpush.msra.mxu0 0.0
    %764 = vmatpush.msra.mxu0 0.0
    %765 = vmatpush.msra.mxu0 0.0
    %766 = vmatpush.msra.mxu0 0.0
    %767 = vmatpush.msra.mxu0 0.0
    %768 = vmatpush.msra.mxu0 0.0
    %769 = vmatpush.msra.mxu0 0.0
    %770 = vmatpush.msra.mxu0 0.0
    %771 = vmatpush.msra.mxu0 0.0
    %772 = vmatpush.msra.mxu0 0.0
    %773 = vmatpush.msra.mxu0 %v750
    %774 = vmatpush.msra.mxu0 %v748
    %775 = vmatmul.f32.gmra.mxu0 %v754
    %v776 = vpop.f32.mrf.mxu0
    %v777 = vadd.f32 %v742, %v776
    %778 = vmatmul.f32.gmra.mxu0 %v757
    %v779 = vpop.f32.mrf.mxu0
    %v780 = vadd.f32 %v745, %v779
    %781 = vdwg.mxu0
    %v782 = vld [vmem:[%s1 + $0x168] sm:$0xf]
    %v783 = vld [vmem:[%s2 + $0x11] sm:$0x1]
    %v784 = vperm.slane %v783, 0
    %v786 = vsel %vm89, %v777, 0
    %v789 = vsel %vm89, %v780, 0
    %v792 = vsel %vm326, %v782, 0
    %794 = vmatpush.msra.mxu0 0.0
    %795 = vmatpush.msra.mxu0 0.0
    %796 = vmatpush.msra.mxu0 0.0
    %797 = vmatpush.msra.mxu0 0.0
    %798 = vmatpush.msra.mxu0 0.0
    %799 = vmatpush.msra.mxu0 0.0
    %800 = vmatpush.msra.mxu0 0.0
    %801 = vmatpush.msra.mxu0 0.0
    %802 = vmatpush.msra.mxu0 0.0
    %803 = vmatpush.msra.mxu0 0.0
    %804 = vmatpush.msra.mxu0 0.0
    %805 = vmatpush.msra.mxu0 0.0
    %806 = vmatpush.msra.mxu0 0.0
    %807 = vmatpush.msra.mxu0 0.0
    %808 = vmatpush.msra.mxu0 0.0
    %809 = vmatpush.msra.mxu0 %v792
    %810 = vmatmul.f32.gmra.mxu0 %v786
    %v811 = vpop.f32.mrf.mxu0
    %v812 = vadd.f32 %v784, %v811
    %813 = vmatmul.f32.gmra.mxu0 %v789
    %v814 = vpop.f32.mrf.mxu0
    %v815 = vadd.f32 %v784, %v814
    %816 = vdwg.mxu0
    %v817 = vadd.f32 %v551, %v812
    %v818 = vadd.f32 %v552, %v815
    %v819 = vld [vmem:[%s2 + $0x12] sm:$0x1]
    %v820 = vld [vmem:[%s2 + $0x13] sm:$0x1]
    %v821 = vsel %vm89, %v817, 0.0
    %822 = vadd.xlane.f32.xlu0 %v821
    %v823 = vpop.xlane.xlu0 %822
    %v824 = vsel %vm89, %v818, 0.0
    %825 = vadd.xlane.f32.xlu0 %v824
    %v826 = vpop.xlane.xlu0 %825
    %v827 = vmul.f32 %v823, %v369
    %v828 = vmul.f32 %v826, %v369
    %v829 = vsub.f32 %v817, %v827
    %v830 = vsub.f32 %v818, %v828
    %v831 = vmul.f32 %v829, %v829
    %v832 = vmul.f32 %v830, %v830
    %v833 = vsel %vm89, %v831, 0.0
    %834 = vadd.xlane.f32.xlu0 %v833
    %v835 = vpop.xlane.xlu0 %834
    %v836 = vsel %vm89, %v832, 0.0
    %837 = vadd.xlane.f32.xlu0 %v836
    %v838 = vpop.xlane.xlu0 %837
    %v839 = vmul.f32 %v835, %v369
    %v840 = vmul.f32 %v838, %v369
    %v841 = vadd.f32 %v839, 1e-05
    %v842 = vadd.f32 %v840, 1e-05
    %v843 = vrsqrt.pop %v841
    %v844 = vmul.f32 %v843, %v841
    %v845 = vmul.f32 %v844, %v843
    %v846 = vmul.f32 0.5, %v845
    %v847 = vsub.f32 1.5, %v846
    %v848 = vmul.f32 %v843, %v847
    %vm849 = vweird.f32 %v841
    %vm850 = vweird.f32 %v843
    %vm851 = vmor %vm849, %vm850
    %v852 = vsel %vm851, %v843, %v848
    %v853 = vrsqrt.pop %v842
    %v854 = vmul.f32 %v853, %v842
    %v855 = vmul.f32 %v854, %v853
    %v856 = vmul.f32 0.5, %v855
    %v857 = vsub.f32 1.5, %v856
    %v858 = vmul.f32 %v853, %v857
    %vm859 = vweird.f32 %v842
    %vm860 = vweird.f32 %v853
    %vm861 = vmor %vm859, %vm860
    %v862 = vsel %vm861, %v853, %v858
    %v863 = vmul.f32 %v829, %v852
    %v864 = vmul.f32 %v830, %v862
    %v865 = vperm.slane %v819, 0
    %v866 = vmul.f32 %v863, %v865
    %v867 = vmul.f32 %v864, %v865
    %v868 = vperm.slane %v820, 0
    %v869 = vadd.f32 %v866, %v868
    %v870 = vadd.f32 %v867, %v868
    %v871 = vld [vmem:[%s1 + $0x170] sm:$0xff]
    %v872 = vld [vmem:[%s1 + $0x178] sm:$0xff]
    %v873 = vld [vmem:[%s1 + $0x180] sm:$0xff]
    %v874 = vld [vmem:[%s1 + $0x188] sm:$0xff]
    %v875 = vld [vmem:[%s2 + $0x16] sm:$0x1]
    %v876 = vperm.slane %v875, 0
    %v878 = vsel %vm89, %v869, 0
    %v881 = vsel %vm89, %v870, 0
    %v884 = vsel %vm89, %v871, 0
    %v887 = vsel %vm89, %v872, 0
    %v890 = vsel %vm89, %v873, 0
    %v893 = vsel %vm89, %v874, 0
    %895 = vmatpush.xpose.msra.mxu0 0.0
    %896 = vmatpush.xpose.msra.mxu0 0.0
    %897 = vmatpush.xpose.msra.mxu0 0.0
    %898 = vmatpush.xpose.msra.mxu0 0.0
    %899 = vmatpush.xpose.msra.mxu0 0.0
    %900 = vmatpush.xpose.msra.mxu0 0.0
    %901 = vmatpush.xpose.msra.mxu0 0.0
    %902 = vmatpush.xpose.msra.mxu0 0.0
    %903 = vmatpush.xpose.msra.mxu0 0.0
    %904 = vmatpush.xpose.msra.mxu0 0.0
    %905 = vmatpush.xpose.msra.mxu0 0.0
    %906 = vmatpush.xpose.msra.mxu0 0.0
    %907 = vmatpush.xpose.msra.mxu0 %v893
    %908 = vmatpush.xpose.msra.mxu0 %v890
    %909 = vmatpush.xpose.msra.mxu0 %v887
    %910 = vmatpush.xpose.msra.mxu0 %v884
    %911 = vmatmul.f32.gmra.mxu0 %v878
    %v912 = vpop.f32.mrf.mxu0
    %v913 = vadd.f32 %v876, %v912
    %914 = vmatmul.f32.gmra.mxu0 %v881
    %v915 = vpop.f32.mrf.mxu0
    %v916 = vadd.f32 %v876, %v915
    %917 = vdwg.mxu0
    %v918 = vmax.f32 %v913, 0.0
    %v919 = vmax.f32 %v916, 0.0
    %v920 = vld [vmem:[%s1 + $0x190] sm:$0xff]
    %v921 = vld [vmem:[%s1 + $0x198] sm:$0xff]
    %v922 = vld [vmem:[%s1 + $0x1a0] sm:$0xff]
    %v923 = vld [vmem:[%s1 + $0x1a8] sm:$0xff]
    %v924 = vld [vmem:[%s2 + $0x17] sm:$0x1]
    %v925 = vperm.slane %v924, 0
    %v927 = vsel %vm469, %v918, 0
    %v930 = vsel %vm469, %v919, 0
    %932 = vmatpush.msra.mxu0 0.0
    %933 = vmatpush.msra.mxu0 0.0
    %934 = vmatpush.msra.mxu0 0.0
    %935 = vmatpush.msra.mxu0 0.0
    %936 = vmatpush.msra.mxu0 0.0
    %937 = vmatpush.msra.mxu0 0.0
    %938 = vmatpush.msra.mxu0 0.0
    %939 = vmatpush.msra.mxu0 0.0
    %940 = vmatpush.msra.mxu0 0.0
    %941 = vmatpush.msra.mxu0 0.0
    %942 = vmatpush.msra.mxu0 0.0
    %943 = vmatpush.msra.mxu0 0.0
    %944 = vmatpush.msra.mxu0 %v923
    %945 = vmatpush.msra.mxu0 %v922
    %946 = vmatpush.msra.mxu0 %v921
    %947 = vmatpush.msra.mxu0 %v920
    %948 = vmatmul.f32.gmra.mxu0 %v927
    %v949 = vpop.f32.mrf.mxu0
    %v950 = vadd.f32 %v925, %v949
    %951 = vmatmul.f32.gmra.mxu0 %v930
    %v952 = vpop.f32.mrf.mxu0
    %v953 = vadd.f32 %v925, %v952
    %954 = vdwg.mxu0
    %v955 = vadd.f32 %v869, %v950
    %v956 = vadd.f32 %v870, %v953
    %v957 = vld [vmem:[%s2 + $0x14] sm:$0x1]
    %v958 = vld [vmem:[%s2 + $0x15] sm:$0x1]
    %v959 = vsel %vm89, %v955, 0.0
    %960 = vadd.xlane.f32.xlu0 %v959
    %v961 = vpop.xlane.xlu0 %960
    %v962 = vsel %vm89, %v956, 0.0
    %963 = vadd.xlane.f32.xlu0 %v962
    %v964 = vpop.xlane.xlu0 %963
    %v965 = vmul.f32 %v961, %v369
    %v966 = vmul.f32 %v964, %v369
    %v967 = vsub.f32 %v955, %v965
    %v968 = vsub.f32 %v956, %v966
    %v969 = vmul.f32 %v967, %v967
    %v970 = vmul.f32 %v968, %v968
    %v971 = vsel %vm89, %v969, 0.0
    %972 = vadd.xlane.f32.xlu0 %v971
    %v973 = vpop.xlane.xlu0 %972
    %v974 = vsel %vm89, %v970, 0.0
    %975 = vadd.xlane.f32.xlu0 %v974
    %v976 = vpop.xlane.xlu0 %975
    %v977 = vmul.f32 %v973, %v369
    %v978 = vmul.f32 %v976, %v369
    %v979 = vadd.f32 %v977, 1e-05
    %v980 = vadd.f32 %v978, 1e-05
    %v981 = vrsqrt.pop %v979
    %v982 = vmul.f32 %v981, %v979
    %v983 = vmul.f32 %v982, %v981
    %v984 = vmul.f32 0.5, %v983
    %v985 = vsub.f32 1.5, %v984
    %v986 = vmul.f32 %v981, %v985
    %vm987 = vweird.f32 %v979
    %vm988 = vweird.f32 %v981
    %vm989 = vmor %vm987, %vm988
    %v990 = vsel %vm989, %v981, %v986
    %v991 = vrsqrt.pop %v980
    %v992 = vmul.f32 %v991, %v980
    %v993 = vmul.f32 %v992, %v991
    %v994 = vmul.f32 0.5, %v993
    %v995 = vsub.f32 1.5, %v994
    %v996 = vmul.f32 %v991, %v995
    %vm997 = vweird.f32 %v980
    %vm998 = vweird.f32 %v991
    %vm999 = vmor %vm997, %vm998
    %v1000 = vsel %vm999, %v991, %v996
    %v1001 = vmul.f32 %v967, %v990
    %v1002 = vmul.f32 %v968, %v1000
    %v1003 = vperm.slane %v957, 0
    %v1004 = vmul.f32 %v1001, %v1003
    %v1005 = vmul.f32 %v1002, %v1003
    %v1006 = vperm.slane %v958, 0
    %v1007 = vadd.f32 %v1004, %v1006
    %v1008 = vadd.f32 %v1005, %v1006
    %v1009 = vld [vmem:[%s1 + $0x1b0] sm:$0xff]
    %v1010 = vld [vmem:[%s1 + $0x1b8] sm:$0xff]
    %v1011 = vld [vmem:[%s2 + $0x18] sm:$0x1]
    %v1012 = vperm.slane %v1011, 0
    %v1014 = vsel %vm89, %v1007, 0
    %v1017 = vsel %vm89, %v1008, 0
    %v1020 = vsel %vm89, %v1009, 0
    %v1023 = vsel %vm89, %v1010, 0
    %1025 = vmatpush.xpose.msra.mxu0 0.0
    %1026 = vmatpush.xpose.msra.mxu0 0.0
    %1027 = vmatpush.xpose.msra.mxu0 0.0
    %1028 = vmatpush.xpose.msra.mxu0 0.0
    %1029 = vmatpush.xpose.msra.mxu0 0.0
    %1030 = vmatpush.xpose.msra.mxu0 0.0
    %1031 = vmatpush.xpose.msra.mxu0 0.0
    %1032 = vmatpush.xpose.msra.mxu0 0.0
    %1033 = vmatpush.xpose.msra.mxu0 0.0
    %1034 = vmatpush.xpose.msra.mxu0 0.0
    %1035 = vmatpush.xpose.msra.mxu0 0.0
    %1036 = vmatpush.xpose.msra.mxu0 0.0
    %1037 = vmatpush.xpose.msra.mxu0 0.0
    %1038 = vmatpush.xpose.msra.mxu0 0.0
    %1039 = vmatpush.xpose.msra.mxu0 %v1023
    %1040 = vmatpush.xpose.msra.mxu0 %v1020
    %1041 = vmatmul.f32.gmra.mxu0 %v1014
    %v1042 = vpop.f32.mrf.mxu0
    %v1043 = vadd.f32 %v1012, %v1042
    %1044 = vmatmul.f32.gmra.mxu0 %v1017
    %v1045 = vpop.f32.mrf.mxu0
    %v1046 = vadd.f32 %v1012, %v1045
    %1047 = vdwg.mxu0
    %1050 = vrot.lane.b32.xlu0 %v1043, 124
    %v1051 = vpop.permute.xlu0 %1050
    %1052 = vrot.lane.b32.xlu0 %v1046, 124
    %v1053 = vpop.permute.xlu0 %1052
    %v1054 = vsel %vm131, %v1043, 0
    %v1056 = vsel %vm131, %v1046, 0
    %v1058 = vsel %vm131, %v1051, 0
    %v1060 = vsel %vm131, %v1053, 0
    %1062 = vmatpush.xpose.msra.mxu0 0.0
    %1063 = vmatpush.xpose.msra.mxu0 0.0
    %1064 = vmatpush.xpose.msra.mxu0 0.0
    %1065 = vmatpush.xpose.msra.mxu0 0.0
    %1066 = vmatpush.xpose.msra.mxu0 0.0
    %1067 = vmatpush.xpose.msra.mxu0 0.0
    %1068 = vmatpush.xpose.msra.mxu0 0.0
    %1069 = vmatpush.xpose.msra.mxu0 0.0
    %1070 = vmatpush.xpose.msra.mxu0 0.0
    %1071 = vmatpush.xpose.msra.mxu0 0.0
    %1072 = vmatpush.xpose.msra.mxu0 0.0
    %1073 = vmatpush.xpose.msra.mxu0 0.0
    %1074 = vmatpush.xpose.msra.mxu0 0.0
    %1075 = vmatpush.xpose.msra.mxu0 0.0
    %1076 = vmatpush.xpose.msra.mxu0 %v1060
    %1077 = vmatpush.xpose.msra.mxu0 %v1058
    %1078 = vmatmul.f32.gmra.mxu0 %v1054
    %v1079 = vpop.f32.mrf.mxu0
    %v1080 = vadd.f32 %v83, %v1079
    %1081 = vmatmul.f32.gmra.mxu0 %v1056
    %v1082 = vpop.f32.mrf.mxu0
    %v1083 = vadd.f32 %v84, %v1082
    %1084 = vdwg.mxu0
    %v1085 = vsel %vm163, %v1080, -inf
    %1086 = vmax.xlane.f32.xlu0 %v1085
    %v1087 = vpop.xlane.xlu0 %1086
    %v1088 = vsel %vm163, %v1083, -inf
    %1089 = vmax.xlane.f32.xlu0 %v1088
    %v1090 = vpop.xlane.xlu0 %1089
    %v1091 = vsub.f32 %v1080, %v1087
    %v1092 = vsub.f32 %v1083, %v1090
    %v1093 = vmul.f32 %v1091, 1.442695
    %v1094 = vpow.pop %v1093
    %v1095 = vmul.f32 %v1092, 1.442695
    %v1096 = vpow.pop %v1095
    %v1097 = vsel %vm163, %v1094, 0.0
    %1098 = vadd.xlane.f32.xlu0 %v1097
    %v1099 = vpop.xlane.xlu0 %1098
    %v1100 = vsel %vm163, %v1096, 0.0
    %1101 = vadd.xlane.f32.xlu0 %v1100
    %v1102 = vpop.xlane.xlu0 %1101
    %v1103 = vrcp.pop %v1099
    %v1104 = vrcp.pop %v1102
    %v1105 = vmul.f32 %v1094, %v1103
    %v1106 = vmul.f32 %v1096, %v1104
    %1107 = vrot.lane.b32.xlu0 %v1043, 126
    %v1108 = vpop.permute.xlu0 %1107
    %1109 = vrot.lane.b32.xlu0 %v1046, 126
    %v1110 = vpop.permute.xlu0 %1109
    %1111 = vrot.lane.b32.xlu0 %v1043, 122
    %v1112 = vpop.permute.xlu0 %1111
    %1113 = vrot.lane.b32.xlu0 %v1046, 122
    %v1114 = vpop.permute.xlu0 %1113
    %v1115 = vsel %vm131, %v1108, 0
    %v1117 = vsel %vm131, %v1110, 0
    %v1119 = vsel %vm131, %v1112, 0
    %v1121 = vsel %vm131, %v1114, 0
    %1123 = vmatpush.xpose.msra.mxu0 0.0
    %1124 = vmatpush.xpose.msra.mxu0 0.0
    %1125 = vmatpush.xpose.msra.mxu0 0.0
    %1126 = vmatpush.xpose.msra.mxu0 0.0
    %1127 = vmatpush.xpose.msra.mxu0 0.0
    %1128 = vmatpush.xpose.msra.mxu0 0.0
    %1129 = vmatpush.xpose.msra.mxu0 0.0
    %1130 = vmatpush.xpose.msra.mxu0 0.0
    %1131 = vmatpush.xpose.msra.mxu0 0.0
    %1132 = vmatpush.xpose.msra.mxu0 0.0
    %1133 = vmatpush.xpose.msra.mxu0 0.0
    %1134 = vmatpush.xpose.msra.mxu0 0.0
    %1135 = vmatpush.xpose.msra.mxu0 0.0
    %1136 = vmatpush.xpose.msra.mxu0 0.0
    %1137 = vmatpush.xpose.msra.mxu0 %v1121
    %1138 = vmatpush.xpose.msra.mxu0 %v1119
    %1139 = vmatmul.f32.gmra.mxu0 %v1115
    %v1140 = vpop.f32.mrf.mxu0
    %v1141 = vadd.f32 %v83, %v1140
    %1142 = vmatmul.f32.gmra.mxu0 %v1117
    %v1143 = vpop.f32.mrf.mxu0
    %v1144 = vadd.f32 %v84, %v1143
    %1145 = vdwg.mxu0
    %v1146 = vsel %vm163, %v1141, -inf
    %1147 = vmax.xlane.f32.xlu0 %v1146
    %v1148 = vpop.xlane.xlu0 %1147
    %v1149 = vsel %vm163, %v1144, -inf
    %1150 = vmax.xlane.f32.xlu0 %v1149
    %v1151 = vpop.xlane.xlu0 %1150
    %v1152 = vsub.f32 %v1141, %v1148
    %v1153 = vsub.f32 %v1144, %v1151
    %v1154 = vmul.f32 %v1152, 1.442695
    %v1155 = vpow.pop %v1154
    %v1156 = vmul.f32 %v1153, 1.442695
    %v1157 = vpow.pop %v1156
    %v1158 = vsel %vm163, %v1155, 0.0
    %1159 = vadd.xlane.f32.xlu0 %v1158
    %v1160 = vpop.xlane.xlu0 %1159
    %v1161 = vsel %vm163, %v1157, 0.0
    %1162 = vadd.xlane.f32.xlu0 %v1161
    %v1163 = vpop.xlane.xlu0 %1162
    %v1164 = vrcp.pop %v1160
    %v1165 = vrcp.pop %v1163
    %v1166 = vmul.f32 %v1155, %v1164
    %v1167 = vmul.f32 %v1157, %v1165
    %1168 = vrot.lane.b32.xlu0 %v1043, 116
    %v1169 = vpop.permute.xlu0 %1168
    %1170 = vrot.lane.b32.xlu0 %v1046, 116
    %v1171 = vpop.permute.xlu0 %1170
    %v1175 = vsel %vm163, %v1166, 0
    %v1178 = vsel %vm163, %v1167, 0
    %1180 = vmatpush.msra.mxu0 0.0
    %1181 = vmatpush.msra.mxu0 0.0
    %1182 = vmatpush.msra.mxu0 0.0
    %1183 = vmatpush.msra.mxu0 0.0
    %1184 = vmatpush.msra.mxu0 0.0
    %1185 = vmatpush.msra.mxu0 0.0
    %1186 = vmatpush.msra.mxu0 0.0
    %1187 = vmatpush.msra.mxu0 0.0
    %1188 = vmatpush.msra.mxu0 0.0
    %1189 = vmatpush.msra.mxu0 0.0
    %1190 = vmatpush.msra.mxu0 0.0
    %1191 = vmatpush.msra.mxu0 0.0
    %1192 = vmatpush.msra.mxu0 0.0
    %1193 = vmatpush.msra.mxu0 0.0
    %1194 = vmatpush.msra.mxu0 %v1171
    %1195 = vmatpush.msra.mxu0 %v1169
    %1196 = vmatmul.f32.gmra.mxu0 %v1175
    %v1197 = vpop.f32.mrf.mxu0
    %v1198 = vadd.f32 0.0, %v1197
    %1199 = vmatmul.f32.gmra.mxu0 %v1178
    %v1200 = vpop.f32.mrf.mxu0
    %v1201 = vadd.f32 0.0, %v1200
    %1202 = vdwg.mxu0
    %1203 = vrot.lane.b32.xlu0 %v1043, 120
    %v1204 = vpop.permute.xlu0 %1203
    %1205 = vrot.lane.b32.xlu0 %v1046, 120
    %v1206 = vpop.permute.xlu0 %1205
    %v1210 = vsel %vm163, %v1105, 0
    %v1213 = vsel %vm163, %v1106, 0
    %1215 = vmatpush.msra.mxu0 0.0
    %1216 = vmatpush.msra.mxu0 0.0
    %1217 = vmatpush.msra.mxu0 0.0
    %1218 = vmatpush.msra.mxu0 0.0
    %1219 = vmatpush.msra.mxu0 0.0
    %1220 = vmatpush.msra.mxu0 0.0
    %1221 = vmatpush.msra.mxu0 0.0
    %1222 = vmatpush.msra.mxu0 0.0
    %1223 = vmatpush.msra.mxu0 0.0
    %1224 = vmatpush.msra.mxu0 0.0
    %1225 = vmatpush.msra.mxu0 0.0
    %1226 = vmatpush.msra.mxu0 0.0
    %1227 = vmatpush.msra.mxu0 0.0
    %1228 = vmatpush.msra.mxu0 0.0
    %1229 = vmatpush.msra.mxu0 %v1206
    %1230 = vmatpush.msra.mxu0 %v1204
    %1231 = vmatmul.f32.gmra.mxu0 %v1210
    %v1232 = vpop.f32.mrf.mxu0
    %v1233 = vadd.f32 %v1198, %v1232
    %1234 = vmatmul.f32.gmra.mxu0 %v1213
    %v1235 = vpop.f32.mrf.mxu0
    %v1236 = vadd.f32 %v1201, %v1235
    %1237 = vdwg.mxu0
    %v1238 = vld [vmem:[%s1 + $0x1c0] sm:$0xf]
    %v1239 = vld [vmem:[%s2 + $0x19] sm:$0x1]
    %v1240 = vperm.slane %v1239, 0
    %v1242 = vsel %vm89, %v1233, 0
    %v1245 = vsel %vm89, %v1236, 0
    %v1248 = vsel %vm326, %v1238, 0
    %1250 = vmatpush.msra.mxu0 0.0
    %1251 = vmatpush.msra.mxu0 0.0
    %1252 = vmatpush.msra.mxu0 0.0
    %1253 = vmatpush.msra.mxu0 0.0
    %1254 = vmatpush.msra.mxu0 0.0
    %1255 = vmatpush.msra.mxu0 0.0
    %1256 = vmatpush.msra.mxu0 0.0
    %1257 = vmatpush.msra.mxu0 0.0
    %1258 = vmatpush.msra.mxu0 0.0
    %1259 = vmatpush.msra.mxu0 0.0
    %1260 = vmatpush.msra.mxu0 0.0
    %1261 = vmatpush.msra.mxu0 0.0
    %1262 = vmatpush.msra.mxu0 0.0
    %1263 = vmatpush.msra.mxu0 0.0
    %1264 = vmatpush.msra.mxu0 0.0
    %1265 = vmatpush.msra.mxu0 %v1248
    %1266 = vmatmul.f32.gmra.mxu0 %v1242
    %v1267 = vpop.f32.mrf.mxu0
    %v1268 = vadd.f32 %v1240, %v1267
    %1269 = vmatmul.f32.gmra.mxu0 %v1245
    %v1270 = vpop.f32.mrf.mxu0
    %v1271 = vadd.f32 %v1240, %v1270
    %1272 = vdwg.mxu0
    %v1273 = vadd.f32 %v1007, %v1268
    %v1274 = vadd.f32 %v1008, %v1271
    %v1275 = vld [vmem:[%s2 + $0x1a] sm:$0x1]
    %v1276 = vld [vmem:[%s2 + $0x1b] sm:$0x1]
    %v1277 = vsel %vm89, %v1273, 0.0
    %1278 = vadd.xlane.f32.xlu0 %v1277
    %v1279 = vpop.xlane.xlu0 %1278
    %v1280 = vsel %vm89, %v1274, 0.0
    %1281 = vadd.xlane.f32.xlu0 %v1280
    %v1282 = vpop.xlane.xlu0 %1281
    %v1283 = vmul.f32 %v1279, %v369
    %v1284 = vmul.f32 %v1282, %v369
    %v1285 = vsub.f32 %v1273, %v1283
    %v1286 = vsub.f32 %v1274, %v1284
    %v1287 = vmul.f32 %v1285, %v1285
    %v1288 = vmul.f32 %v1286, %v1286
    %v1289 = vsel %vm89, %v1287, 0.0
    %1290 = vadd.xlane.f32.xlu0 %v1289
    %v1291 = vpop.xlane.xlu0 %1290
    %v1292 = vsel %vm89, %v1288, 0.0
    %1293 = vadd.xlane.f32.xlu0 %v1292
    %v1294 = vpop.xlane.xlu0 %1293
    %v1295 = vmul.f32 %v1291, %v369
    %v1296 = vmul.f32 %v1294, %v369
    %v1297 = vadd.f32 %v1295, 1e-05
    %v1298 = vadd.f32 %v1296, 1e-05
    %v1299 = vrsqrt.pop %v1297
    %v1300 = vmul.f32 %v1299, %v1297
    %v1301 = vmul.f32 %v1300, %v1299
    %v1302 = vmul.f32 0.5, %v1301
    %v1303 = vsub.f32 1.5, %v1302
    %v1304 = vmul.f32 %v1299, %v1303
    %vm1305 = vweird.f32 %v1297
    %vm1306 = vweird.f32 %v1299
    %vm1307 = vmor %vm1305, %vm1306
    %v1308 = vsel %vm1307, %v1299, %v1304
    %v1309 = vrsqrt.pop %v1298
    %v1310 = vmul.f32 %v1309, %v1298
    %v1311 = vmul.f32 %v1310, %v1309
    %v1312 = vmul.f32 0.5, %v1311
    %v1313 = vsub.f32 1.5, %v1312
    %v1314 = vmul.f32 %v1309, %v1313
    %vm1315 = vweird.f32 %v1298
    %vm1316 = vweird.f32 %v1309
    %vm1317 = vmor %vm1315, %vm1316
    %v1318 = vsel %vm1317, %v1309, %v1314
    %v1319 = vmul.f32 %v1285, %v1308
    %v1320 = vmul.f32 %v1286, %v1318
    %v1321 = vperm.slane %v1275, 0
    %v1322 = vmul.f32 %v1319, %v1321
    %v1323 = vmul.f32 %v1320, %v1321
    %v1324 = vperm.slane %v1276, 0
    %v1325 = vadd.f32 %v1322, %v1324
    %v1326 = vadd.f32 %v1323, %v1324
    %v1327 = vld [vmem:[%s1 + $0x1c8] sm:$0xff]
    %v1328 = vld [vmem:[%s1 + $0x1d0] sm:$0xff]
    %v1329 = vld [vmem:[%s1 + $0x1d8] sm:$0xff]
    %v1330 = vld [vmem:[%s1 + $0x1e0] sm:$0xff]
    %v1331 = vld [vmem:[%s2 + $0x1e] sm:$0x1]
    %v1332 = vperm.slane %v1331, 0
    %v1334 = vsel %vm89, %v1325, 0
    %v1337 = vsel %vm89, %v1326, 0
    %v1340 = vsel %vm89, %v1327, 0
    %v1343 = vsel %vm89, %v1328, 0
    %v1346 = vsel %vm89, %v1329, 0
    %v1349 = vsel %vm89, %v1330, 0
    %1351 = vmatpush.xpose.msra.mxu0 0.0
    %1352 = vmatpush.xpose.msra.mxu0 0.0
    %1353 = vmatpush.xpose.msra.mxu0 0.0
    %1354 = vmatpush.xpose.msra.mxu0 0.0
    %1355 = vmatpush.xpose.msra.mxu0 0.0
    %1356 = vmatpush.xpose.msra.mxu0 0.0
    %1357 = vmatpush.xpose.msra.mxu0 0.0
    %1358 = vmatpush.xpose.msra.mxu0 0.0
    %1359 = vmatpush.xpose.msra.mxu0 0.0
    %1360 = vmatpush.xpose.msra.mxu0 0.0
    %1361 = vmatpush.xpose.msra.mxu0 0.0
    %1362 = vmatpush.xpose.msra.mxu0 0.0
    %1363 = vmatpush.xpose.msra.mxu0 %v1349
    %1364 = vmatpush.xpose.msra.mxu0 %v1346
    %1365 = vmatpush.xpose.msra.mxu0 %v1343
    %1366 = vmatpush.xpose.msra.mxu0 %v1340
    %1367 = vmatmul.f32.gmra.mxu0 %v1334
    %v1368 = vpop.f32.mrf.mxu0
    %v1369 = vadd.f32 %v1332, %v1368
    %1370 = vmatmul.f32.gmra.mxu0 %v1337
    %v1371 = vpop.f32.mrf.mxu0
    %v1372 = vadd.f32 %v1332, %v1371
    %1373 = vdwg.mxu0
    %v1374 = vmax.f32 %v1369, 0.0
    %v1375 = vmax.f32 %v1372, 0.0
    %v1376 = vld [vmem:[%s1 + $0x1e8] sm:$0xff]
    %v1377 = vld [vmem:[%s1 + $0x1f0] sm:$0xff]
    %v1378 = vld [vmem:[%s1 + $0x1f8] sm:$0xff]
    %v1379 = vld [vmem:[%s1 + $0x200] sm:$0xff]
    %v1380 = vld [vmem:[%s2 + $0x1f] sm:$0x1]
    %v1381 = vperm.slane %v1380, 0
    %v1383 = vsel %vm469, %v1374, 0
    %v1386 = vsel %vm469, %v1375, 0
    %1388 = vmatpush.msra.mxu0 0.0
    %1389 = vmatpush.msra.mxu0 0.0
    %1390 = vmatpush.msra.mxu0 0.0
    %1391 = vmatpush.msra.mxu0 0.0
    %1392 = vmatpush.msra.mxu0 0.0
    %1393 = vmatpush.msra.mxu0 0.0
    %1394 = vmatpush.msra.mxu0 0.0
    %1395 = vmatpush.msra.mxu0 0.0
    %1396 = vmatpush.msra.mxu0 0.0
    %1397 = vmatpush.msra.mxu0 0.0
    %1398 = vmatpush.msra.mxu0 0.0
    %1399 = vmatpush.msra.mxu0 0.0
    %1400 = vmatpush.msra.mxu0 %v1379
    %1401 = vmatpush.msra.mxu0 %v1378
    %1402 = vmatpush.msra.mxu0 %v1377
    %1403 = vmatpush.msra.mxu0 %v1376
    %1404 = vmatmul.f32.gmra.mxu0 %v1383
    %v1405 = vpop.f32.mrf.mxu0
    %v1406 = vadd.f32 %v1381, %v1405
    %1407 = vmatmul.f32.gmra.mxu0 %v1386
    %v1408 = vpop.f32.mrf.mxu0
    %v1409 = vadd.f32 %v1381, %v1408
    %1410 = vdwg.mxu0
    %v1411 = vadd.f32 %v1325, %v1406
    %v1412 = vadd.f32 %v1326, %v1409
    %v1413 = vld [vmem:[%s2 + $0x1c] sm:$0x1]
    %v1414 = vld [vmem:[%s2 + $0x1d] sm:$0x1]
    %v1415 = vsel %vm89, %v1411, 0.0
    %1416 = vadd.xlane.f32.xlu0 %v1415
    %v1417 = vpop.xlane.xlu0 %1416
    %v1418 = vsel %vm89, %v1412, 0.0
    %1419 = vadd.xlane.f32.xlu0 %v1418
    %v1420 = vpop.xlane.xlu0 %1419
    %v1421 = vmul.f32 %v1417, %v369
    %v1422 = vmul.f32 %v1420, %v369
    %v1423 = vsub.f32 %v1411, %v1421
    %v1424 = vsub.f32 %v1412, %v1422
    %v1425 = vmul.f32 %v1423, %v1423
    %v1426 = vmul.f32 %v1424, %v1424
    %v1427 = vsel %vm89, %v1425, 0.0
    %1428 = vadd.xlane.f32.xlu0 %v1427
    %v1429 = vpop.xlane.xlu0 %1428
    %v1430 = vsel %vm89, %v1426, 0.0
    %1431 = vadd.xlane.f32.xlu0 %v1430
    %v1432 = vpop.xlane.xlu0 %1431
    %v1433 = vmul.f32 %v1429, %v369
    %v1434 = vmul.f32 %v1432, %v369
    %v1435 = vadd.f32 %v1433, 1e-05
    %v1436 = vadd.f32 %v1434, 1e-05
    %v1437 = vrsqrt.pop %v1435
    %v1438 = vmul.f32 %v1437, %v1435
    %v1439 = vmul.f32 %v1438, %v1437
    %v1440 = vmul.f32 0.5, %v1439
    %v1441 = vsub.f32 1.5, %v1440
    %v1442 = vmul.f32 %v1437, %v1441
    %vm1443 = vweird.f32 %v1435
    %vm1444 = vweird.f32 %v1437
    %vm1445 = vmor %vm1443, %vm1444
    %v1446 = vsel %vm1445, %v1437, %v1442
    %v1447 = vrsqrt.pop %v1436
    %v1448 = vmul.f32 %v1447, %v1436
    %v1449 = vmul.f32 %v1448, %v1447
    %v1450 = vmul.f32 0.5, %v1449
    %v1451 = vsub.f32 1.5, %v1450
    %v1452 = vmul.f32 %v1447, %v1451
    %vm1453 = vweird.f32 %v1436
    %vm1454 = vweird.f32 %v1447
    %vm1455 = vmor %vm1453, %vm1454
    %v1456 = vsel %vm1455, %v1447, %v1452
    %v1457 = vmul.f32 %v1423, %v1446
    %v1458 = vmul.f32 %v1424, %v1456
    %v1459 = vperm.slane %v1413, 0
    %v1460 = vmul.f32 %v1457, %v1459
    %v1461 = vmul.f32 %v1458, %v1459
    %v1462 = vperm.slane %v1414, 0
    %v1463 = vadd.f32 %v1460, %v1462
    %v1464 = vadd.f32 %v1461, %v1462
    %v1465 = vld [vmem:[%s3 + $0x10] sm:$0x3]
    %v1467 = vsel %vm163, %v1465, 0
    %1469 = vmatpush.msra.mxu0 0.0
    %1470 = vmatpush.msra.mxu0 0.0
    %1471 = vmatpush.msra.mxu0 0.0
    %1472 = vmatpush.msra.mxu0 0.0
    %1473 = vmatpush.msra.mxu0 0.0
    %1474 = vmatpush.msra.mxu0 0.0
    %1475 = vmatpush.msra.mxu0 0.0
    %1476 = vmatpush.msra.mxu0 0.0
    %1477 = vmatpush.msra.mxu0 0.0
    %1478 = vmatpush.msra.mxu0 0.0
    %1479 = vmatpush.msra.mxu0 0.0
    %1480 = vmatpush.msra.mxu0 0.0
    %1481 = vmatpush.msra.mxu0 0.0
    %1482 = vmatpush.msra.mxu0 0.0
    %1483 = vmatpush.msra.mxu0 %v1464
    %1484 = vmatpush.msra.mxu0 %v1463
    %1485 = vmatmul.f32.gmra.mxu0 %v1467
    %v1486 = vpop.f32.mrf.mxu0
    %v1487 = vadd.f32 0.0, %v1486
    %1488 = vdwg.mxu0
    %v1489 = vld [vmem:[%s1 + $0x80] sm:$0xff]
    %v1490 = vld [vmem:[%s1 + $0x88] sm:$0xff]
    %v1491 = vld [vmem:[%s1 + $0x90] sm:$0xff]
    %v1492 = vld [vmem:[%s1 + $0x98] sm:$0xff]
    %v1493 = vld [vmem:[%s1 + $0xa0] sm:$0xff]
    %v1494 = vld [vmem:[%s1 + $0xa8] sm:$0xff]
    %v1495 = vld [vmem:[%s1 + $0xb0] sm:$0xff]
    %v1496 = vld [vmem:[%s1 + $0xb8] sm:$0xff]
    %v1497 = vld [vmem:[%s1 + $0xc0] sm:$0xff]
    %v1498 = vld [vmem:[%s1 + $0xc8] sm:$0xff]
    %v1499 = vld [vmem:[%s1 + $0xd0] sm:$0xff]
    %v1500 = vld [vmem:[%s1 + $0xd8] sm:$0xff]
    %v1501 = vld [vmem:[%s1 + $0xe0] sm:$0xff]
    %v1502 = vld [vmem:[%s1 + $0xe8] sm:$0xff]
    %v1503 = vld [vmem:[%s1 + $0xf0] sm:$0xff]
    %v1504 = vld [vmem:[%s1 + $0xf8] sm:$0xff]
    %v1505 = vld [vmem:[%s2] sm:$0x1]
    %v1506 = vperm.slane %v1505, 0
    %v1508 = vsel %vm89, %v1487, 0
    %v1511 = vsel %vm89, %v1489, 0
    %v1514 = vsel %vm89, %v1490, 0
    %v1517 = vsel %vm89, %v1491, 0
    %v1520 = vsel %vm89, %v1492, 0
    %v1523 = vsel %vm89, %v1493, 0
    %v1526 = vsel %vm89, %v1494, 0
    %v1529 = vsel %vm89, %v1495, 0
    %v1532 = vsel %vm89, %v1496, 0
    %v1535 = vsel %vm89, %v1497, 0
    %v1538 = vsel %vm89, %v1498, 0
    %v1541 = vsel %vm89, %v1499, 0
    %v1544 = vsel %vm89, %v1500, 0
    %v1547 = vsel %vm89, %v1501, 0
    %v1550 = vsel %vm89, %v1502, 0
    %v1553 = vsel %vm89, %v1503, 0
    %v1556 = vsel %vm89, %v1504, 0
    %1558 = vmatpush.xpose.msra.mxu0 %v1556
    %1559 = vmatpush.xpose.msra.mxu0 %v1553
    %1560 = vmatpush.xpose.msra.mxu0 %v1550
    %1561 = vmatpush.xpose.msra.mxu0 %v1547
    %1562 = vmatpush.xpose.msra.mxu0 %v1544
    %1563 = vmatpush.xpose.msra.mxu0 %v1541
    %1564 = vmatpush.xpose.msra.mxu0 %v1538
    %1565 = vmatpush.xpose.msra.mxu0 %v1535
    %1566 = vmatpush.xpose.msra.mxu0 %v1532
    %1567 = vmatpush.xpose.msra.mxu0 %v1529
    %1568 = vmatpush.xpose.msra.mxu0 %v1526
    %1569 = vmatpush.xpose.msra.mxu0 %v1523
    %1570 = vmatpush.xpose.msra.mxu0 %v1520
    %1571 = vmatpush.xpose.msra.mxu0 %v1517
    %1572 = vmatpush.xpose.msra.mxu0 %v1514
    %1573 = vmatpush.xpose.msra.mxu0 %v1511
    %1574 = vmatmul.f32.gmra.mxu0 %v1508
    %v1575 = vpop.f32.mrf.mxu0
    %v1576 = vadd.f32 %v1506, %v1575
    %1577 = vdwg.mxu0
    %1578 = vst [vmem:[#allocation2] sm:$0x3] %v1576
    // Predicated region
    $region18: #{tpu_custom_call.1} parent=1 // pred_check
      _
    $region19: #{tpu_custom_call.1} parent=1 // pred_check_branch
      %1580 = sbr.rel (0) target = $region21
    $region20: #{tpu_custom_call.1} parent=1 // pred_region
      %1582 = vsyncadd [#allocation3], 0
      %s1584 = sshll.u32 [#allocation2], 4
      %s1585 = int_to_ptr.vmem [resolvable:$true] %s1584
      %s1586 = sshll.u32 %s4, 4
      %s1587 = int_to_ptr.hbm [resolvable:$true] %s1586
      %1589 = dma.vmem_to_hbm [thread:$0]  %s1585, 32, %s1587, [#allocation3]
    $region21: #{tpu_custom_call.1} parent=1 // pred_fallthru
      _
    // Predicated region
    $region22: #{tpu_custom_call.1} parent=1 // pred_check
      _
    $region23: #{tpu_custom_call.1} parent=1 // pred_check_branch
      %1591 = sbr.rel (0) target = $region25
    $region24: #{tpu_custom_call.1} parent=1 // pred_region
      %1593 = dma.done [#allocation3], 32
    $region25: #{tpu_custom_call.1} parent=1 // pred_fallthru
      _
    %1594 = vsyncpa [#allocation3], 1

</llo_original>
